<compile_context>
chip_gen: v7x
topology: tpu7x:2x2x1
jax: 0.10.0
libtpu: 0.0.40
codegen_flags: <defaults>
</compile_context>

<pallas_src>
import jax
import jax.numpy as jnp
from jax.experimental import pallas as pl
from jax.experimental.pallas import tpu as pltpu

BN_EPS = 1e-5

N_PER_GRAPH = 16
N_GRAPHS = 2
N = N_PER_GRAPH * N_GRAPHS
IN_DIM = 16
HIDDEN = 32
OUT_DIM = 8
N_LAYER = 3


def _bn_relu_residual(h, x_res, gamma, beta, mean_row):
    """BatchNorm1d (training / batch stats, biased var) -> ReLU -> residual add.

    Batch mean/var are computed with (1, N) mean-row matmuls so the sublane
    reduction runs on the MXU (which has slack) instead of the XLU.
    All elementwise math is f32 (safe on v5e, which has no bf16 VALU/EUP).
    """
    mu = jnp.dot(mean_row, h, preferred_element_type=jnp.float32)        # (1, H)
    d = h - mu
    var = jnp.dot(mean_row, d * d, preferred_element_type=jnp.float32)   # (1, H), biased
    hn = d * jax.lax.rsqrt(var + BN_EPS) * gamma + beta
    return jnp.maximum(hn, 0.0) + x_res


def cy2c_kernel(x_ref, mats_ref, pool_ref, wslab_ref, pstack_ref, out_ref):
    H = HIDDEN
    adj = mats_ref[0]            # (N, N) bf16 normalized adjacency (edge_index, edge_attr)
    cyc = mats_ref[1]            # (N, N) bf16 normalized cycle adjacency
    x = x_ref[...]               # (N, IN_DIM) bf16

    # ---- unpack the single bf16 weight slab (static slices -> views/cheap) ----
    ws = wslab_ref[...]                                          # (IN_DIM + 5H, 2H) bf16
    w_emb = ws[0:IN_DIM, :H]                                     # (IN_DIM, H)
    w0 = ws[IN_DIM + 2 * H:IN_DIM + 3 * H, :]                    # [w_conv0 | w_conv2] (H, 2H)
    wlin = ws[IN_DIM + 3 * H:IN_DIM + 5 * H, :OUT_DIM]           # vstack([wlin_a, wlin_b]) (2H, OUT)

    # ---- unpack the single f32 per-channel-parameter slab ----
    p = pstack_ref[...]                                          # (14, H) f32
    b_emb = p[0:1]
    b2, g2, be2 = p[10:11], p[11:12], p[12:13]
    b_lin = p[13:14, :OUT_DIM]

    mean_row = jnp.full((1, N), 1.0 / N, dtype=jnp.float32)      # BN batch mean as a matmul

    # x_0 = dropout(emb(x)); dropout p = 0.0 -> identity
    x0 = jnp.dot(x, w_emb, preferred_element_type=jnp.float32) + b_emb          # (N, H) f32

    # Fused entry of both branches: one lane-dense (N,H)x(H,2H) dot, then split columns.
    xw0 = jnp.dot(x0.astype(jnp.bfloat16), w0, preferred_element_type=jnp.float32)   # (N, 2H)
    h_a = jnp.dot(adj, xw0[:, :H].astype(jnp.bfloat16),
                  preferred_element_type=jnp.float32) + p[1:2]                  # conv0 bias
    h_b = jnp.dot(cyc, xw0[:, H:].astype(jnp.bfloat16),
                  preferred_element_type=jnp.float32) + b2

    xa = _bn_relu_residual(h_a, x0, p[4:5], p[7:8], mean_row)     # branch-A layer 0
    xb = _bn_relu_residual(h_b, x0, g2, be2, mean_row)            # branch-B (cycle) block

    # Remaining branch-A GCN blocks (layers 1 .. N_LAYER-1), statically unrolled.
    for i in range(1, N_LAYER):
        wc_i = ws[IN_DIM + (i - 1) * H:IN_DIM + i * H, :H]
        bc_i = p[1 + i:2 + i]
        gc_i = p[4 + i:5 + i]
        be_i = p[7 + i:8 + i]
        xw = jnp.dot(xa.astype(jnp.bfloat16), wc_i, preferred_element_type=jnp.float32)
        h = jnp.dot(adj, xw.astype(jnp.bfloat16), preferred_element_type=jnp.float32) + bc_i
        xa = _bn_relu_residual(h, xa, gc_i, be_i, mean_row)

    # Fused global_mean_pool + lin1(cat([aa, bb], 1)):
    #   pool @ [xa | xb]  -> (G, 2H), then (G,2H) @ vstack([wlin_a, wlin_b]) + b.
    xcat = jnp.concatenate([xa, xb], axis=1).astype(jnp.bfloat16)                # (N, 2H)
    pooled = jnp.dot(pool_ref[...], xcat, preferred_element_type=jnp.float32)    # (G, 2H)
    out = jnp.dot(pooled.astype(jnp.bfloat16), wlin,
                  preferred_element_type=jnp.float32) + b_lin                    # (G, OUT)
    # TODO(synk): (G, OUT_DIM)=(2,8) store is lane-masked; negligible at this size.
    out_ref[...] = out


def _pad_cols(a, width):
    return jnp.pad(a, ((0, 0), (0, width - a.shape[1])))


def cy2c_forward(x, adj_norm, cyc_norm, pool, params):
    H, G = HIDDEN, pool.shape[0]

    # One bf16 slab with every matmul weight (MXU bf16 path; f32 accumulate in-kernel).
    wslab = jnp.concatenate([
        _pad_cols(params["w_emb"], 2 * H),                                   # rows 0 : IN_DIM
        _pad_cols(params["w_conv"][1], 2 * H),                               # IN_DIM : +H
        _pad_cols(params["w_conv"][2], 2 * H),                               # +H : +2H
        jnp.concatenate([params["w_conv"][0], params["w_conv2"]], axis=1),   # +2H : +3H (fused)
        _pad_cols(jnp.concatenate([params["w_lin_a"], params["w_lin_b"]], axis=0), 2 * H),
    ], axis=0).astype(jnp.bfloat16)                                          # (IN_DIM + 5H, 2H)

    # One f32 slab with every per-channel vector (biases, BN gamma/beta, lin1 bias).
    pstack = jnp.concatenate([
        params["b_emb"],
        params["b_conv"][0], params["b_conv"][1], params["b_conv"][2],
        params["bn_gamma"][0], params["bn_gamma"][1], params["bn_gamma"][2],
        params["bn_beta"][0], params["bn_beta"][1], params["bn_beta"][2],
        params["b_conv2"], params["bn2_gamma"], params["bn2_beta"],
        _pad_cols(params["b_lin"], H),
    ], axis=0).astype(jnp.float32)                                           # (14, H)

    mats = jnp.stack([adj_norm, cyc_norm]).astype(jnp.bfloat16)              # (2, N, N)
    args = (x.astype(jnp.bfloat16), mats, pool.astype(jnp.bfloat16), wslab, pstack)

    flops = int(
        2 * N * (IN_DIM * H + H * 2 * H + 2 * N * H + (N_LAYER - 1) * (H * H + N * H))
        + (N_LAYER + 1) * 2 * 2 * N * H          # BN stats matmuls
        + 2 * G * N * 2 * H                      # pooling
        + 2 * G * 2 * H * OUT_DIM)               # final linear
    bytes_accessed = int(sum(a.size * a.dtype.itemsize for a in args) + G * OUT_DIM * 4)

    vmem = pl.BlockSpec(memory_space=pltpu.MemorySpace.VMEM)
    return pl.pallas_call(
        cy2c_kernel,
        out_shape=jax.ShapeDtypeStruct((G, OUT_DIM), jnp.float32),
        in_specs=[vmem] * len(args),
        out_specs=vmem,
        cost_estimate=pl.CostEstimate(
            flops=flops,
            transcendentals=(N_LAYER + 1) * H,
            bytes_accessed=bytes_accessed),
    )(*args)


# ----------------------------- plain-JAX glue ------------------------------

def build_norm_adj(edge_index, edge_weight, num_nodes):
    """Dense D^{-1/2} (A + I) D^{-1/2} matching PyG GCNConv gcn_norm semantics."""
    row, col = edge_index[0], edge_index[1]
    a = jnp.zeros((num_nodes, num_nodes), jnp.float32)
    a = a.at[col, row].add(edge_weight)               # aggregate at target (col)
    a = a + jnp.eye(num_nodes, dtype=jnp.float32)     # self loops, weight 1
    deg = a.sum(axis=1)
    dinv = jnp.where(deg > 0, jax.lax.rsqrt(deg), 0.0)
    return dinv[:, None] * a * dinv[None, :]


def build_pool_matrix(batch, num_graphs):
    onehot = (batch[None, :] == jnp.arange(num_graphs, dtype=batch.dtype)[:, None])
    onehot = onehot.astype(jnp.float32)
    counts = jnp.maximum(onehot.sum(axis=1, keepdims=True), 1.0)
    return onehot / counts


def init_params(key):
    ks = jax.random.split(key, 9)
    w = lambda k, shape: 0.1 * jax.random.normal(k, shape, jnp.float32)
    return dict(
        w_emb=w(ks[0], (IN_DIM, HIDDEN)),
        b_emb=w(ks[1], (1, HIDDEN)),
        w_conv=w(ks[2], (N_LAYER, HIDDEN, HIDDEN)),
        b_conv=w(ks[3], (N_LAYER, 1, HIDDEN)),
        bn_gamma=jnp.ones((N_LAYER, 1, HIDDEN), jnp.float32),   # PyTorch BatchNorm defaults
        bn_beta=jnp.zeros((N_LAYER, 1, HIDDEN), jnp.float32),
        w_conv2=w(ks[4], (HIDDEN, HIDDEN)),
        b_conv2=w(ks[5], (1, HIDDEN)),
        bn2_gamma=jnp.ones((1, HIDDEN), jnp.float32),
        bn2_beta=jnp.zeros((1, HIDDEN), jnp.float32),
        w_lin_a=w(ks[6], (HIDDEN, OUT_DIM)),
        w_lin_b=w(ks[7], (HIDDEN, OUT_DIM)),
        b_lin=w(ks[8], (1, OUT_DIM)),
    )


def cy2c_reference(x, adj, cyc, pool, params):
    """Pure-JAX f32 reference (same math as the PyTorch module forward)."""
    x0 = x @ params["w_emb"] + params["b_emb"]

    def block(xx, a, w, b, g, be):
        h = a @ (xx @ w) + b
        mu = h.mean(0, keepdims=True)
        var = ((h - mu) ** 2).mean(0, keepdims=True)
        hn = (h - mu) / jnp.sqrt(var + BN_EPS) * g + be
        return jnp.maximum(hn, 0.0) + xx

    xa = x0
    for i in range(N_LAYER):
        xa = block(xa, adj, params["w_conv"][i], params["b_conv"][i],
                   params["bn_gamma"][i], params["bn_beta"][i])
    xb = block(x0, cyc, params["w_conv2"], params["b_conv2"],
               params["bn2_gamma"], params["bn2_beta"])
    aa = pool @ xa
    bb = pool @ xb
    return aa @ params["w_lin_a"] + bb @ params["w_lin_b"] + params["b_lin"]


if __name__ == "__main__":
    key = jax.random.PRNGKey(0)
    k_x, k_attr = jax.random.split(key, 2)

    # node features
    x = jax.random.normal(k_x, (N, IN_DIM), jnp.float32)

    # edge_index: ring within each graph, both directions
    src, dst = [], []
    for g in range(N_GRAPHS):
        off = g * N_PER_GRAPH
        for i in range(N_PER_GRAPH):
            j = (i + 1) % N_PER_GRAPH
            src += [off + i, off + j]
            dst += [off + j, off + i]
    edge_index = jnp.array([src, dst], jnp.int32)
    edge_attr = jax.random.uniform(k_attr, (edge_index.shape[1],), jnp.float32, 0.5, 1.5)

    # cycle_index: chord edges across each ring (unit weight)
    csrc, cdst = [], []
    for g in range(N_GRAPHS):
        off = g * N_PER_GRAPH
        for i in range(N_PER_GRAPH):
            j = (i + N_PER_GRAPH // 2) % N_PER_GRAPH
            csrc.append(off + i)
            cdst.append(off + j)
    cycle_index = jnp.array([csrc, cdst], jnp.int32)

    batch = jnp.repeat(jnp.arange(N_GRAPHS, dtype=jnp.int32), N_PER_GRAPH)

    # glue: densify graph structure
    adj_norm = build_norm_adj(edge_index, edge_attr, N)
    cyc_norm = build_norm_adj(cycle_index, jnp.ones((cycle_index.shape[1],), jnp.float32), N)
    pool = build_pool_matrix(batch, N_GRAPHS)

    params = init_params(jax.random.PRNGKey(12345))

    out = cy2c_forward(x, adj_norm, cyc_norm, pool, params)
    out = jax.block_until_ready(out)

    # Reference evaluated on the same bf16-rounded matmul operands the kernel uses
    # (isolates kernel-transcription error from the deliberate bf16 MXU precision choice).
    rb = lambda a: a.astype(jnp.bfloat16).astype(jnp.float32)
    params_ref = dict(params)
    for k in ("w_emb", "w_conv", "w_conv2", "w_lin_a", "w_lin_b"):
        params_ref[k] = rb(params[k])
    ref = jax.block_until_ready(
        cy2c_reference(rb(x), rb(adj_norm), rb(cyc_norm), rb(pool), params_ref))

    assert out.shape == (N_GRAPHS, OUT_DIM)
    assert bool(jnp.all(jnp.isfinite(out)))
    assert bool(jnp.allclose(out, ref, atol=5e-2, rtol=5e-2))

    print("KERNEL_OK")
</pallas_src>

<mosaic_0001>
module attributes {stable_mosaic.version = 11 : i64} {
  func.func @cy2c_kernel(%arg0: memref<32x16xbf16, #tpu.memory_space<vmem>>, %arg1: memref<2x32x32xbf16, #tpu.memory_space<vmem>>, %arg2: memref<2x32xbf16, #tpu.memory_space<vmem>>, %arg3: memref<176x64xbf16, #tpu.memory_space<vmem>>, %arg4: memref<14x32xf32, #tpu.memory_space<vmem>>, %arg5: memref<2x8xf32, #tpu.memory_space<vmem>>) attributes {dimension_semantics = [], scalar_prefetch = 0 : i64, scratch_operands = 0 : i64, tpu.core_type = #tpu.core_type<tc>} {
    %c0 = arith.constant 0 : index
    %c0_0 = arith.constant 0 : index
    %c0_1 = arith.constant 0 : index
    %0 = vector.load %arg1[%c0, %c0_0, %c0_1] : memref<2x32x32xbf16, #tpu.memory_space<vmem>>, vector<1x32x32xbf16>
    %1 = vector.shape_cast %0 : vector<1x32x32xbf16> to vector<32x32xbf16>
    %c1 = arith.constant 1 : index
    %c0_2 = arith.constant 0 : index
    %c0_3 = arith.constant 0 : index
    %2 = vector.load %arg1[%c1, %c0_2, %c0_3] : memref<2x32x32xbf16, #tpu.memory_space<vmem>>, vector<1x32x32xbf16>
    %3 = vector.shape_cast %2 : vector<1x32x32xbf16> to vector<32x32xbf16>
    %c0_4 = arith.constant 0 : index
    %c0_5 = arith.constant 0 : index
    %4 = vector.load %arg0[%c0_4, %c0_5] : memref<32x16xbf16, #tpu.memory_space<vmem>>, vector<32x16xbf16>
    %c0_6 = arith.constant 0 : index
    %c0_7 = arith.constant 0 : index
    %5 = vector.load %arg3[%c0_6, %c0_7] : memref<176x64xbf16, #tpu.memory_space<vmem>>, vector<176x64xbf16>
    %6 = vector.extract_strided_slice %5 {offsets = [0, 0], sizes = [16, 32], strides = [1, 1]} : vector<176x64xbf16> to vector<16x32xbf16>
    %7 = vector.extract_strided_slice %5 {offsets = [80, 0], sizes = [32, 64], strides = [1, 1]} : vector<176x64xbf16> to vector<32x64xbf16>
    %8 = vector.extract_strided_slice %5 {offsets = [112, 0], sizes = [64, 8], strides = [1, 1]} : vector<176x64xbf16> to vector<64x8xbf16>
    %c0_8 = arith.constant 0 : index
    %c0_9 = arith.constant 0 : index
    %9 = vector.load %arg4[%c0_8, %c0_9] : memref<14x32xf32, #tpu.memory_space<vmem>>, vector<14x32xf32>
    %10 = vector.extract_strided_slice %9 {offsets = [0, 0], sizes = [1, 32], strides = [1, 1]} : vector<14x32xf32> to vector<1x32xf32>
    %11 = vector.extract_strided_slice %9 {offsets = [10, 0], sizes = [1, 32], strides = [1, 1]} : vector<14x32xf32> to vector<1x32xf32>
    %12 = vector.extract_strided_slice %9 {offsets = [11, 0], sizes = [1, 32], strides = [1, 1]} : vector<14x32xf32> to vector<1x32xf32>
    %13 = vector.extract_strided_slice %9 {offsets = [12, 0], sizes = [1, 32], strides = [1, 1]} : vector<14x32xf32> to vector<1x32xf32>
    %14 = vector.extract_strided_slice %9 {offsets = [13, 0], sizes = [1, 8], strides = [1, 1]} : vector<14x32xf32> to vector<1x8xf32>
    %cst = arith.constant 3.125000e-02 : f32
    %15 = vector.broadcast %cst : f32 to vector<1x32xf32>
    %cst_10 = arith.constant dense<0.000000e+00> : vector<32x32xf32>
    %16 = tpu.matmul %4, %6, %cst_10 {dimension_numbers = #tpu.dot_dimension_numbers<[1], [0], [0], [1], [0, 0, 1, 1], [], []>} : vector<32x16xbf16>, vector<16x32xbf16>, vector<32x32xf32> -> vector<32x32xf32>
    %17 = vector.broadcast %10 : vector<1x32xf32> to vector<32x32xf32>
    %18 = arith.addf %16, %17 : vector<32x32xf32>
    %19 = arith.truncf %18 : vector<32x32xf32> to vector<32x32xbf16>
    %cst_11 = arith.constant dense<0.000000e+00> : vector<32x64xf32>
    %20 = tpu.matmul %19, %7, %cst_11 {dimension_numbers = #tpu.dot_dimension_numbers<[1], [0], [0], [1], [0, 0, 1, 1], [], []>} : vector<32x32xbf16>, vector<32x64xbf16>, vector<32x64xf32> -> vector<32x64xf32>
    %21 = vector.extract_strided_slice %20 {offsets = [0, 0], sizes = [32, 32], strides = [1, 1]} : vector<32x64xf32> to vector<32x32xf32>
    %22 = arith.truncf %21 : vector<32x32xf32> to vector<32x32xbf16>
    %cst_12 = arith.constant dense<0.000000e+00> : vector<32x32xf32>
    %23 = tpu.matmul %1, %22, %cst_12 {dimension_numbers = #tpu.dot_dimension_numbers<[1], [0], [0], [1], [0, 0, 1, 1], [], []>} : vector<32x32xbf16>, vector<32x32xbf16>, vector<32x32xf32> -> vector<32x32xf32>
    %24 = vector.extract_strided_slice %9 {offsets = [1, 0], sizes = [1, 32], strides = [1, 1]} : vector<14x32xf32> to vector<1x32xf32>
    %25 = vector.broadcast %24 : vector<1x32xf32> to vector<32x32xf32>
    %26 = arith.addf %23, %25 : vector<32x32xf32>
    %27 = vector.extract_strided_slice %20 {offsets = [0, 32], sizes = [32, 32], strides = [1, 1]} : vector<32x64xf32> to vector<32x32xf32>
    %28 = arith.truncf %27 : vector<32x32xf32> to vector<32x32xbf16>
    %cst_13 = arith.constant dense<0.000000e+00> : vector<32x32xf32>
    %29 = tpu.matmul %3, %28, %cst_13 {dimension_numbers = #tpu.dot_dimension_numbers<[1], [0], [0], [1], [0, 0, 1, 1], [], []>} : vector<32x32xbf16>, vector<32x32xbf16>, vector<32x32xf32> -> vector<32x32xf32>
    %30 = vector.broadcast %11 : vector<1x32xf32> to vector<32x32xf32>
    %31 = arith.addf %29, %30 : vector<32x32xf32>
    %32 = vector.extract_strided_slice %9 {offsets = [4, 0], sizes = [1, 32], strides = [1, 1]} : vector<14x32xf32> to vector<1x32xf32>
    %33 = vector.extract_strided_slice %9 {offsets = [7, 0], sizes = [1, 32], strides = [1, 1]} : vector<14x32xf32> to vector<1x32xf32>
    %cst_14 = arith.constant dense<0.000000e+00> : vector<1x32xf32>
    %34 = tpu.matmul %15, %26, %cst_14 {dimension_numbers = #tpu.dot_dimension_numbers<[1], [0], [0], [1], [0, 0, 1, 1], [], []>} : vector<1x32xf32>, vector<32x32xf32>, vector<1x32xf32> -> vector<1x32xf32>
    %35 = vector.broadcast %34 : vector<1x32xf32> to vector<32x32xf32>
    %36 = arith.subf %26, %35 : vector<32x32xf32>
    %37 = arith.mulf %36, %36 : vector<32x32xf32>
    %cst_15 = arith.constant dense<0.000000e+00> : vector<1x32xf32>
    %38 = tpu.matmul %15, %37, %cst_15 {dimension_numbers = #tpu.dot_dimension_numbers<[1], [0], [0], [1], [0, 0, 1, 1], [], []>} : vector<1x32xf32>, vector<32x32xf32>, vector<1x32xf32> -> vector<1x32xf32>
    %cst_16 = arith.constant 9.99999974E-6 : f32
    %39 = vector.broadcast %cst_16 : f32 to vector<1x32xf32>
    %40 = arith.addf %38, %39 : vector<1x32xf32>
    %41 = math.rsqrt %40 : vector<1x32xf32>
    %42 = vector.broadcast %41 : vector<1x32xf32> to vector<32x32xf32>
    %43 = arith.mulf %36, %42 : vector<32x32xf32>
    %44 = vector.broadcast %32 : vector<1x32xf32> to vector<32x32xf32>
    %45 = arith.mulf %43, %44 : vector<32x32xf32>
    %46 = vector.broadcast %33 : vector<1x32xf32> to vector<32x32xf32>
    %47 = arith.addf %45, %46 : vector<32x32xf32>
    %cst_17 = arith.constant 0.000000e+00 : f32
    %48 = vector.broadcast %cst_17 : f32 to vector<32x32xf32>
    %49 = arith.maximumf %47, %48 : vector<32x32xf32>
    %50 = arith.addf %49, %18 : vector<32x32xf32>
    %cst_18 = arith.constant dense<0.000000e+00> : vector<1x32xf32>
    %51 = tpu.matmul %15, %31, %cst_18 {dimension_numbers = #tpu.dot_dimension_numbers<[1], [0], [0], [1], [0, 0, 1, 1], [], []>} : vector<1x32xf32>, vector<32x32xf32>, vector<1x32xf32> -> vector<1x32xf32>
    %52 = vector.broadcast %51 : vector<1x32xf32> to vector<32x32xf32>
    %53 = arith.subf %31, %52 : vector<32x32xf32>
    %54 = arith.mulf %53, %53 : vector<32x32xf32>
    %cst_19 = arith.constant dense<0.000000e+00> : vector<1x32xf32>
    %55 = tpu.matmul %15, %54, %cst_19 {dimension_numbers = #tpu.dot_dimension_numbers<[1], [0], [0], [1], [0, 0, 1, 1], [], []>} : vector<1x32xf32>, vector<32x32xf32>, vector<1x32xf32> -> vector<1x32xf32>
    %cst_20 = arith.constant 9.99999974E-6 : f32
    %56 = vector.broadcast %cst_20 : f32 to vector<1x32xf32>
    %57 = arith.addf %55, %56 : vector<1x32xf32>
    %58 = math.rsqrt %57 : vector<1x32xf32>
    %59 = vector.broadcast %58 : vector<1x32xf32> to vector<32x32xf32>
    %60 = arith.mulf %53, %59 : vector<32x32xf32>
    %61 = vector.broadcast %12 : vector<1x32xf32> to vector<32x32xf32>
    %62 = arith.mulf %60, %61 : vector<32x32xf32>
    %63 = vector.broadcast %13 : vector<1x32xf32> to vector<32x32xf32>
    %64 = arith.addf %62, %63 : vector<32x32xf32>
    %cst_21 = arith.constant 0.000000e+00 : f32
    %65 = vector.broadcast %cst_21 : f32 to vector<32x32xf32>
    %66 = arith.maximumf %64, %65 : vector<32x32xf32>
    %67 = arith.addf %66, %18 : vector<32x32xf32>
    %68 = vector.extract_strided_slice %5 {offsets = [16, 0], sizes = [32, 32], strides = [1, 1]} : vector<176x64xbf16> to vector<32x32xbf16>
    %69 = vector.extract_strided_slice %9 {offsets = [2, 0], sizes = [1, 32], strides = [1, 1]} : vector<14x32xf32> to vector<1x32xf32>
    %70 = vector.extract_strided_slice %9 {offsets = [5, 0], sizes = [1, 32], strides = [1, 1]} : vector<14x32xf32> to vector<1x32xf32>
    %71 = vector.extract_strided_slice %9 {offsets = [8, 0], sizes = [1, 32], strides = [1, 1]} : vector<14x32xf32> to vector<1x32xf32>
    %72 = arith.truncf %50 : vector<32x32xf32> to vector<32x32xbf16>
    %cst_22 = arith.constant dense<0.000000e+00> : vector<32x32xf32>
    %73 = tpu.matmul %72, %68, %cst_22 {dimension_numbers = #tpu.dot_dimension_numbers<[1], [0], [0], [1], [0, 0, 1, 1], [], []>} : vector<32x32xbf16>, vector<32x32xbf16>, vector<32x32xf32> -> vector<32x32xf32>
    %74 = arith.truncf %73 : vector<32x32xf32> to vector<32x32xbf16>
    %cst_23 = arith.constant dense<0.000000e+00> : vector<32x32xf32>
    %75 = tpu.matmul %1, %74, %cst_23 {dimension_numbers = #tpu.dot_dimension_numbers<[1], [0], [0], [1], [0, 0, 1, 1], [], []>} : vector<32x32xbf16>, vector<32x32xbf16>, vector<32x32xf32> -> vector<32x32xf32>
    %76 = vector.broadcast %69 : vector<1x32xf32> to vector<32x32xf32>
    %77 = arith.addf %75, %76 : vector<32x32xf32>
    %cst_24 = arith.constant dense<0.000000e+00> : vector<1x32xf32>
    %78 = tpu.matmul %15, %77, %cst_24 {dimension_numbers = #tpu.dot_dimension_numbers<[1], [0], [0], [1], [0, 0, 1, 1], [], []>} : vector<1x32xf32>, vector<32x32xf32>, vector<1x32xf32> -> vector<1x32xf32>
    %79 = vector.broadcast %78 : vector<1x32xf32> to vector<32x32xf32>
    %80 = arith.subf %77, %79 : vector<32x32xf32>
    %81 = arith.mulf %80, %80 : vector<32x32xf32>
    %cst_25 = arith.constant dense<0.000000e+00> : vector<1x32xf32>
    %82 = tpu.matmul %15, %81, %cst_25 {dimension_numbers = #tpu.dot_dimension_numbers<[1], [0], [0], [1], [0, 0, 1, 1], [], []>} : vector<1x32xf32>, vector<32x32xf32>, vector<1x32xf32> -> vector<1x32xf32>
    %cst_26 = arith.constant 9.99999974E-6 : f32
    %83 = vector.broadcast %cst_26 : f32 to vector<1x32xf32>
    %84 = arith.addf %82, %83 : vector<1x32xf32>
    %85 = math.rsqrt %84 : vector<1x32xf32>
    %86 = vector.broadcast %85 : vector<1x32xf32> to vector<32x32xf32>
    %87 = arith.mulf %80, %86 : vector<32x32xf32>
    %88 = vector.broadcast %70 : vector<1x32xf32> to vector<32x32xf32>
    %89 = arith.mulf %87, %88 : vector<32x32xf32>
    %90 = vector.broadcast %71 : vector<1x32xf32> to vector<32x32xf32>
    %91 = arith.addf %89, %90 : vector<32x32xf32>
    %cst_27 = arith.constant 0.000000e+00 : f32
    %92 = vector.broadcast %cst_27 : f32 to vector<32x32xf32>
    %93 = arith.maximumf %91, %92 : vector<32x32xf32>
    %94 = arith.addf %93, %50 : vector<32x32xf32>
    %95 = vector.extract_strided_slice %5 {offsets = [48, 0], sizes = [32, 32], strides = [1, 1]} : vector<176x64xbf16> to vector<32x32xbf16>
    %96 = vector.extract_strided_slice %9 {offsets = [3, 0], sizes = [1, 32], strides = [1, 1]} : vector<14x32xf32> to vector<1x32xf32>
    %97 = vector.extract_strided_slice %9 {offsets = [6, 0], sizes = [1, 32], strides = [1, 1]} : vector<14x32xf32> to vector<1x32xf32>
    %98 = vector.extract_strided_slice %9 {offsets = [9, 0], sizes = [1, 32], strides = [1, 1]} : vector<14x32xf32> to vector<1x32xf32>
    %99 = arith.truncf %94 : vector<32x32xf32> to vector<32x32xbf16>
    %cst_28 = arith.constant dense<0.000000e+00> : vector<32x32xf32>
    %100 = tpu.matmul %99, %95, %cst_28 {dimension_numbers = #tpu.dot_dimension_numbers<[1], [0], [0], [1], [0, 0, 1, 1], [], []>} : vector<32x32xbf16>, vector<32x32xbf16>, vector<32x32xf32> -> vector<32x32xf32>
    %101 = arith.truncf %100 : vector<32x32xf32> to vector<32x32xbf16>
    %cst_29 = arith.constant dense<0.000000e+00> : vector<32x32xf32>
    %102 = tpu.matmul %1, %101, %cst_29 {dimension_numbers = #tpu.dot_dimension_numbers<[1], [0], [0], [1], [0, 0, 1, 1], [], []>} : vector<32x32xbf16>, vector<32x32xbf16>, vector<32x32xf32> -> vector<32x32xf32>
    %103 = vector.broadcast %96 : vector<1x32xf32> to vector<32x32xf32>
    %104 = arith.addf %102, %103 : vector<32x32xf32>
    %cst_30 = arith.constant dense<0.000000e+00> : vector<1x32xf32>
    %105 = tpu.matmul %15, %104, %cst_30 {dimension_numbers = #tpu.dot_dimension_numbers<[1], [0], [0], [1], [0, 0, 1, 1], [], []>} : vector<1x32xf32>, vector<32x32xf32>, vector<1x32xf32> -> vector<1x32xf32>
    %106 = vector.broadcast %105 : vector<1x32xf32> to vector<32x32xf32>
    %107 = arith.subf %104, %106 : vector<32x32xf32>
    %108 = arith.mulf %107, %107 : vector<32x32xf32>
    %cst_31 = arith.constant dense<0.000000e+00> : vector<1x32xf32>
    %109 = tpu.matmul %15, %108, %cst_31 {dimension_numbers = #tpu.dot_dimension_numbers<[1], [0], [0], [1], [0, 0, 1, 1], [], []>} : vector<1x32xf32>, vector<32x32xf32>, vector<1x32xf32> -> vector<1x32xf32>
    %cst_32 = arith.constant 9.99999974E-6 : f32
    %110 = vector.broadcast %cst_32 : f32 to vector<1x32xf32>
    %111 = arith.addf %109, %110 : vector<1x32xf32>
    %112 = math.rsqrt %111 : vector<1x32xf32>
    %113 = vector.broadcast %112 : vector<1x32xf32> to vector<32x32xf32>
    %114 = arith.mulf %107, %113 : vector<32x32xf32>
    %115 = vector.broadcast %97 : vector<1x32xf32> to vector<32x32xf32>
    %116 = arith.mulf %114, %115 : vector<32x32xf32>
    %117 = vector.broadcast %98 : vector<1x32xf32> to vector<32x32xf32>
    %118 = arith.addf %116, %117 : vector<32x32xf32>
    %cst_33 = arith.constant 0.000000e+00 : f32
    %119 = vector.broadcast %cst_33 : f32 to vector<32x32xf32>
    %120 = arith.maximumf %118, %119 : vector<32x32xf32>
    %121 = arith.addf %120, %94 : vector<32x32xf32>
    %122 = tpu.concatenate %121, %67 in 1 : vector<32x32xf32>, vector<32x32xf32> -> vector<32x64xf32>
    %123 = arith.truncf %122 : vector<32x64xf32> to vector<32x64xbf16>
    %c0_34 = arith.constant 0 : index
    %c0_35 = arith.constant 0 : index
    %124 = vector.load %arg2[%c0_34, %c0_35] : memref<2x32xbf16, #tpu.memory_space<vmem>>, vector<2x32xbf16>
    %cst_36 = arith.constant dense<0.000000e+00> : vector<2x64xf32>
    %125 = tpu.matmul %124, %123, %cst_36 {dimension_numbers = #tpu.dot_dimension_numbers<[1], [0], [0], [1], [0, 0, 1, 1], [], []>} : vector<2x32xbf16>, vector<32x64xbf16>, vector<2x64xf32> -> vector<2x64xf32>
    %126 = arith.truncf %125 : vector<2x64xf32> to vector<2x64xbf16>
    %cst_37 = arith.constant dense<0.000000e+00> : vector<2x8xf32>
    %127 = tpu.matmul %126, %8, %cst_37 {dimension_numbers = #tpu.dot_dimension_numbers<[1], [0], [0], [1], [0, 0, 1, 1], [], []>} : vector<2x64xbf16>, vector<64x8xbf16>, vector<2x8xf32> -> vector<2x8xf32>
    %128 = vector.broadcast %14 : vector<1x8xf32> to vector<2x8xf32>
    %129 = arith.addf %127, %128 : vector<2x8xf32>
    %c0_38 = arith.constant 0 : index
    %c0_39 = arith.constant 0 : index
    %130 = vector.load %arg5[%c0_38, %c0_39] : memref<2x8xf32, #tpu.memory_space<vmem>>, vector<2x8xf32>
    tpu.vector_store %arg5[%c0_38, %c0_39], %129 {strides = array<i32>} : memref<2x8xf32, #tpu.memory_space<vmem>>, vector<2x8xf32>,
    return
  }
}

</mosaic_0001>

<llo_original>
// kernel: tpu_custom_call.1
$region0: #{tpu_custom_call.1}
  #allocation0 [shape = 'u32[]', space=smem, size = 0x4, offset = 0x4, fixed_abs, tag = 'smem constant byte address 0x4 - core index']
  #allocation1 [shape = 'u32[144,128]{1,0:T(1,128)}', space=vmem, size = 0x12000, scoped, tag = 'internal scratch']
  %s0 = inlined_call_operand.vmem [shape: bf16[32,16], index: 0, kind: input, shape index: {}]
  %s1 = inlined_call_operand.vmem [shape: bf16[2,32,32], index: 1, kind: input, shape index: {}]
  %s2 = inlined_call_operand.vmem [shape: bf16[2,32], index: 2, kind: input, shape index: {}]
  %s3 = inlined_call_operand.vmem [shape: bf16[176,64], index: 3, kind: input, shape index: {}]
  %s4 = inlined_call_operand.vmem [shape: f32[14,32], index: 4, kind: input, shape index: {}]
  %s5 = inlined_call_operand.hbm [shape: f32[2,8], index: 5, kind: output, shape index: {}]
  %s6 = sld [smem:[#allocation0]]
  $region30: #{tpu_custom_call.1} parent=0
    _
  %s8 = ssub.s32 1, %s6
  %s9 = scalar_select 0, %s8, %s6
  $region1: #{tpu_custom_call.1} parent=0
    #allocation2 [shape = 'u8[1024]{0}', space=vmem, size = 0x400, scoped, tag = 'output window, operand 0, single buffered']
    #allocation3 [shape = 's32[1]{0}', space=sflag, size = 0x4, scoped, tag = 'scoped memory for tpu_custom_call.1']
    %10 = vsyncpa [#allocation3], 0
    // Predicated region
    $region2: #{tpu_custom_call.1} parent=1 // pred_check
      _
    $region3: #{tpu_custom_call.1} parent=1 // pred_check_branch
      %12 = sbr.rel (0) target = $region5
    $region4: #{tpu_custom_call.1} parent=1 // pred_region
      _
    $region5: #{tpu_custom_call.1} parent=1 // pred_fallthru
      _
    // Predicated region
    $region6: #{tpu_custom_call.1} parent=1 // pred_check
      _
    $region7: #{tpu_custom_call.1} parent=1 // pred_check_branch
      %14 = sbr.rel (0) target = $region9
    $region8: #{tpu_custom_call.1} parent=1 // pred_region
      _
    $region9: #{tpu_custom_call.1} parent=1 // pred_fallthru
      _
    // Predicated region
    $region10: #{tpu_custom_call.1} parent=1 // pred_check
      _
    $region11: #{tpu_custom_call.1} parent=1 // pred_check_branch
      %16 = sbr.rel (0) target = $region13
    $region12: #{tpu_custom_call.1} parent=1 // pred_region
      _
    $region13: #{tpu_custom_call.1} parent=1 // pred_fallthru
      _
    // Predicated region
    $region14: #{tpu_custom_call.1} parent=1 // pred_check
      _
    $region15: #{tpu_custom_call.1} parent=1 // pred_check_branch
      %18 = sbr.rel (0) target = $region17
    $region16: #{tpu_custom_call.1} parent=1 // pred_region
      _
    $region17: #{tpu_custom_call.1} parent=1 // pred_fallthru
      _
    // Predicated region
    $region18: #{tpu_custom_call.1} parent=1 // pred_check
      _
    $region19: #{tpu_custom_call.1} parent=1 // pred_check_branch
      %20 = sbr.rel (0) target = $region21
    $region20: #{tpu_custom_call.1} parent=1 // pred_region
      _
    $region21: #{tpu_custom_call.1} parent=1 // pred_fallthru
      _
    %v22 = vld [vmem:[%s1] sm:$0xf]
    %v23 = vld [vmem:[%s1 + $0x4] sm:$0xf]
    %v24 = vld [vmem:[%s1 + $0x8] sm:$0xf]
    %v25 = vld [vmem:[%s1 + $0xc] sm:$0xf]
    %s26 = scalar_lea.vmem %s1, 16
    %v27 = vld [vmem:[%s26] sm:$0xf]
    %v28 = vld [vmem:[%s26 + $0x4] sm:$0xf]
    %v29 = vld [vmem:[%s26 + $0x8] sm:$0xf]
    %v30 = vld [vmem:[%s26 + $0xc] sm:$0xf]
    %v31 = vld [vmem:[%s0] sm:$0xf]
    %v32 = vld [vmem:[%s0 + $0x4] sm:$0xf]
    %v33 = vld [vmem:[%s0 + $0x8] sm:$0xf]
    %v34 = vld [vmem:[%s0 + $0xc] sm:$0xf]
    %v35 = vld [vmem:[%s3] sm:$0xf]
    %v36 = vld [vmem:[%s3 + $0x4] sm:$0xf]
    %v37 = vld [vmem:[%s3 + $0x8] sm:$0xf]
    %v38 = vld [vmem:[%s3 + $0xc] sm:$0xf]
    %v39 = vld [vmem:[%s3 + $0x10] sm:$0xf]
    %v40 = vld [vmem:[%s3 + $0x14] sm:$0xf]
    %v41 = vld [vmem:[%s3 + $0x18] sm:$0xf]
    %v42 = vld [vmem:[%s3 + $0x1c] sm:$0xf]
    %v43 = vld [vmem:[%s3 + $0x20] sm:$0xf]
    %v44 = vld [vmem:[%s3 + $0x24] sm:$0xf]
    %v45 = vld [vmem:[%s3 + $0x28] sm:$0xf]
    %v46 = vld [vmem:[%s3 + $0x2c] sm:$0xf]
    %v47 = vld [vmem:[%s3 + $0x30] sm:$0xf]
    %v48 = vld [vmem:[%s3 + $0x34] sm:$0xf]
    %v49 = vld [vmem:[%s3 + $0x38] sm:$0xf]
    %v50 = vld [vmem:[%s3 + $0x3c] sm:$0xf]
    %v51 = vld [vmem:[%s3 + $0x40] sm:$0xf]
    %v52 = vld [vmem:[%s3 + $0x44] sm:$0xf]
    %v53 = vld [vmem:[%s3 + $0x48] sm:$0xf]
    %v54 = vld [vmem:[%s3 + $0x4c] sm:$0xf]
    %v55 = vld [vmem:[%s3 + $0x50] sm:$0xf]
    %v56 = vld [vmem:[%s3 + $0x54] sm:$0xf]
    %v57 = vld [vmem:[%s4] sm:$0xff]
    %v58 = vld [vmem:[%s4 + $0x8] sm:$0x3f]
    %v59 = vlaneseq
    %v60 = vshrl.u32 %v59, 7
    %v61 = vsub.s32 0, %v60
    %v62 = vrot.slane %v57, %v61
    %v67 = vunpack.c.l.b16 %v31
    %v68 = vunpack.c.l.b16 %v32
    %v69 = vunpack.c.l.b16 %v33
    %v70 = vunpack.c.l.b16 %v34
    %v71 = vpack.c.b16 %v68, %v67
    %v72 = vpack.c.b16 %v70, %v69
    %v75 = vunpack.c.l.b16 %v35
    %v76 = vunpack.c.l.b16 %v36
    %v77 = vpack.c.b16 %v76, %v75
    %vm79 = vcmask 130048
    %v81 = vsel %vm79, %v71, 0
    %v84 = vsel %vm79, %v72, 0
    %86 = vmatprep.subr.bf16.mxu0 0
    %87 = vmatpush1.bf16.msra.mxu0 %v77
    %88 = vmatprep.subr.bf16.mxu0 0
    %89 = vmatpush1.bf16.msra.mxu0 0
    %90 = vmatprep.subr.bf16.mxu0 0
    %91 = vmatpush1.bf16.msra.mxu0 0
    %92 = vmatprep.subr.bf16.mxu0 0
    %93 = vmatpush1.bf16.msra.mxu0 0
    %94 = vmatprep.subr.bf16.mxu0 0
    %95 = vmatpush1.bf16.msra.mxu0 0
    %96 = vmatprep.subr.bf16.mxu0 0
    %97 = vmatpush1.bf16.msra.mxu0 0
    %98 = vmatprep.subr.bf16.mxu0 0
    %99 = vmatpush1.bf16.msra.mxu0 0
    %100 = vmatprep.subr.bf16.mxu0 0
    %101 = vmatpush1.bf16.msra.mxu0 0
    %102 = vmatprep.subr.bf16.mxu0 0
    %103 = vmatpush1.bf16.msra.mxu0 0
    %104 = vmatprep.subr.bf16.mxu0 0
    %105 = vmatpush1.bf16.msra.mxu0 0
    %106 = vmatprep.subr.bf16.mxu0 0
    %107 = vmatpush1.bf16.msra.mxu0 0
    %108 = vmatprep.subr.bf16.mxu0 0
    %109 = vmatpush1.bf16.msra.mxu0 0
    %110 = vmatprep.subr.bf16.mxu0 0
    %111 = vmatpush1.bf16.msra.mxu0 0
    %112 = vmatprep.subr.bf16.mxu0 0
    %113 = vmatpush1.bf16.msra.mxu0 0
    %114 = vmatprep.subr.bf16.mxu0 0
    %115 = vmatpush1.bf16.msra.mxu0 0
    %116 = vmatprep.subr.bf16.mxu0 0
    %117 = vmatpush1.bf16.msra.mxu0 0
    %118 = vmatprep.mubr.bf16.mxu0 0
    %119 = vmatmul.mubr.bf16.gmra.mrb[0].mxu0 %v81
    %v120 = vpop.f32.mrb[0].mxu0
    %v121 = vadd.f32 %v62, %v120
    %v122 = vpop.f32.mrb[0].mxu0
    %v123 = vpop.f32.mrb[0].mxu0
    %v124 = vadd.f32 %v62, %v123
    %v125 = vpop.f32.mrb[0].mxu0
    %126 = vmatprep.mubr.bf16.mxu0 0
    %127 = vmatmul.mubr.bf16.gmra.mrb[0].mxu0 %v84
    %v128 = vpop.f32.mrb[0].mxu0
    %v129 = vadd.f32 %v62, %v128
    %v130 = vpop.f32.mrb[0].mxu0
    %v131 = vpop.f32.mrb[0].mxu0
    %v132 = vadd.f32 %v62, %v131
    %v133 = vpop.f32.mrb[0].mxu0
    %134 = vdwg.mxu0
    %v135 = vpack.c.bf16 %v124, %v121
    %v136 = vpack.c.bf16 %v132, %v129
    %v141 = vunpack.c.l.b16 %v45
    %v142 = vunpack.c.l.b16 %v46
    %v143 = vunpack.c.l.b16 %v47
    %v144 = vunpack.c.l.b16 %v48
    %v145 = vpack.c.b16 %v142, %v141
    %v146 = vpack.c.b16 %v144, %v143
    %vm149 = vcmask 261120
    %v151 = vsel %vm149, %v135, 0
    %v154 = vsel %vm149, %v136, 0
    %156 = vmatprep.subr.bf16.mxu0 0
    %157 = vmatpush1.bf16.msra.mxu0 %v145
    %158 = vmatprep.subr.bf16.mxu0 0
    %159 = vmatpush1.bf16.msra.mxu0 %v146
    %160 = vmatprep.subr.bf16.mxu0 0
    %161 = vmatpush1.bf16.msra.mxu0 0
    %162 = vmatprep.subr.bf16.mxu0 0
    %163 = vmatpush1.bf16.msra.mxu0 0
    %164 = vmatprep.subr.bf16.mxu0 0
    %165 = vmatpush1.bf16.msra.mxu0 0
    %166 = vmatprep.subr.bf16.mxu0 0
    %167 = vmatpush1.bf16.msra.mxu0 0
    %168 = vmatprep.subr.bf16.mxu0 0
    %169 = vmatpush1.bf16.msra.mxu0 0
    %170 = vmatprep.subr.bf16.mxu0 0
    %171 = vmatpush1.bf16.msra.mxu0 0
    %172 = vmatprep.subr.bf16.mxu0 0
    %173 = vmatpush1.bf16.msra.mxu0 0
    %174 = vmatprep.subr.bf16.mxu0 0
    %175 = vmatpush1.bf16.msra.mxu0 0
    %176 = vmatprep.subr.bf16.mxu0 0
    %177 = vmatpush1.bf16.msra.mxu0 0
    %178 = vmatprep.subr.bf16.mxu0 0
    %179 = vmatpush1.bf16.msra.mxu0 0
    %180 = vmatprep.subr.bf16.mxu0 0
    %181 = vmatpush1.bf16.msra.mxu0 0
    %182 = vmatprep.subr.bf16.mxu0 0
    %183 = vmatpush1.bf16.msra.mxu0 0
    %184 = vmatprep.subr.bf16.mxu0 0
    %185 = vmatpush1.bf16.msra.mxu0 0
    %186 = vmatprep.subr.bf16.mxu0 0
    %187 = vmatpush1.bf16.msra.mxu0 0
    %188 = vmatprep.mubr.bf16.mxu0 0
    %189 = vmatmul.mubr.bf16.gmra.mrb[0].mxu0 %v151
    %v190 = vpop.f32.mrb[0].mxu0
    %v191 = vadd.f32 0.0, %v190
    %v192 = vpop.f32.mrb[0].mxu0
    %v193 = vpop.f32.mrb[0].mxu0
    %v194 = vadd.f32 0.0, %v193
    %v195 = vpop.f32.mrb[0].mxu0
    %196 = vmatprep.mubr.bf16.mxu0 0
    %197 = vmatmul.mubr.bf16.gmra.mrb[0].mxu0 %v154
    %v198 = vpop.f32.mrb[0].mxu0
    %v199 = vadd.f32 0.0, %v198
    %v200 = vpop.f32.mrb[0].mxu0
    %v201 = vpop.f32.mrb[0].mxu0
    %v202 = vadd.f32 0.0, %v201
    %v203 = vpop.f32.mrb[0].mxu0
    %204 = vdwg.mxu0
    %v205 = vpack.c.bf16 %v194, %v191
    %v206 = vpack.c.bf16 %v202, %v199
    %v207 = vlaneseq
    %v208 = vshrl.u32 %v207, 7
    %v209 = vsub.s32 1, %v208
    %v210 = vrot.slane %v57, %v209
    %v215 = vunpack.c.l.b16 %v22
    %v216 = vunpack.c.l.b16 %v23
    %v217 = vunpack.c.l.b16 %v24
    %v218 = vunpack.c.l.b16 %v25
    %v219 = vpack.c.b16 %v216, %v215
    %v220 = vpack.c.b16 %v218, %v217
    %v222 = vsel %vm149, %v219, 0
    %v225 = vsel %vm149, %v220, 0
    %227 = vmatprep.subr.bf16.mxu0 0
    %228 = vmatpush1.bf16.msra.mxu0 %v205
    %229 = vmatprep.subr.bf16.mxu0 0
    %230 = vmatpush1.bf16.msra.mxu0 %v206
    %231 = vmatprep.subr.bf16.mxu0 0
    %232 = vmatpush1.bf16.msra.mxu0 0
    %233 = vmatprep.subr.bf16.mxu0 0
    %234 = vmatpush1.bf16.msra.mxu0 0
    %235 = vmatprep.subr.bf16.mxu0 0
    %236 = vmatpush1.bf16.msra.mxu0 0
    %237 = vmatprep.subr.bf16.mxu0 0
    %238 = vmatpush1.bf16.msra.mxu0 0
    %239 = vmatprep.subr.bf16.mxu0 0
    %240 = vmatpush1.bf16.msra.mxu0 0
    %241 = vmatprep.subr.bf16.mxu0 0
    %242 = vmatpush1.bf16.msra.mxu0 0
    %243 = vmatprep.subr.bf16.mxu0 0
    %244 = vmatpush1.bf16.msra.mxu0 0
    %245 = vmatprep.subr.bf16.mxu0 0
    %246 = vmatpush1.bf16.msra.mxu0 0
    %247 = vmatprep.subr.bf16.mxu0 0
    %248 = vmatpush1.bf16.msra.mxu0 0
    %249 = vmatprep.subr.bf16.mxu0 0
    %250 = vmatpush1.bf16.msra.mxu0 0
    %251 = vmatprep.subr.bf16.mxu0 0
    %252 = vmatpush1.bf16.msra.mxu0 0
    %253 = vmatprep.subr.bf16.mxu0 0
    %254 = vmatpush1.bf16.msra.mxu0 0
    %255 = vmatprep.subr.bf16.mxu0 0
    %256 = vmatpush1.bf16.msra.mxu0 0
    %257 = vmatprep.subr.bf16.mxu0 0
    %258 = vmatpush1.bf16.msra.mxu0 0
    %259 = vmatprep.mubr.bf16.mxu0 0
    %260 = vmatmul.mubr.bf16.gmra.mrb[0].mxu0 %v222
    %v261 = vpop.f32.mrb[0].mxu0
    %v262 = vadd.f32 %v210, %v261
    %v263 = vpop.f32.mrb[0].mxu0
    %v264 = vpop.f32.mrb[0].mxu0
    %v265 = vadd.f32 %v210, %v264
    %v266 = vpop.f32.mrb[0].mxu0
    %267 = vmatprep.mubr.bf16.mxu0 0
    %268 = vmatmul.mubr.bf16.gmra.mrb[0].mxu0 %v225
    %v269 = vpop.f32.mrb[0].mxu0
    %v270 = vadd.f32 %v210, %v269
    %v271 = vpop.f32.mrb[0].mxu0
    %v272 = vpop.f32.mrb[0].mxu0
    %v273 = vadd.f32 %v210, %v272
    %v274 = vpop.f32.mrb[0].mxu0
    %275 = vdwg.mxu0
    %v276 = vlaneseq
    %v277 = vshrl.u32 %v276, 7
    %v278 = vsub.s32 2, %v277
    %v279 = vrot.slane %v58, %v278
    %v284 = vunpack.c.l.b16 %v27
    %v285 = vunpack.c.l.b16 %v28
    %v286 = vunpack.c.l.b16 %v29
    %v287 = vunpack.c.l.b16 %v30
    %v288 = vpack.c.b16 %v285, %v284
    %v289 = vpack.c.b16 %v287, %v286
    %292 = vrot.lane.b32.xlu0 %v205, 96
    %v293 = vpop.permute.xlu0 %292
    %294 = vrot.lane.b32.xlu0 %v206, 96
    %v295 = vpop.permute.xlu0 %294
    %v299 = vsel %vm149, %v288, 0
    %v302 = vsel %vm149, %v289, 0
    %304 = vmatprep.subr.bf16.mxu0 0
    %305 = vmatpush1.bf16.msra.mxu0 %v293
    %306 = vmatprep.subr.bf16.mxu0 0
    %307 = vmatpush1.bf16.msra.mxu0 %v295
    %308 = vmatprep.subr.bf16.mxu0 0
    %309 = vmatpush1.bf16.msra.mxu0 0
    %310 = vmatprep.subr.bf16.mxu0 0
    %311 = vmatpush1.bf16.msra.mxu0 0
    %312 = vmatprep.subr.bf16.mxu0 0
    %313 = vmatpush1.bf16.msra.mxu0 0
    %314 = vmatprep.subr.bf16.mxu0 0
    %315 = vmatpush1.bf16.msra.mxu0 0
    %316 = vmatprep.subr.bf16.mxu0 0
    %317 = vmatpush1.bf16.msra.mxu0 0
    %318 = vmatprep.subr.bf16.mxu0 0
    %319 = vmatpush1.bf16.msra.mxu0 0
    %320 = vmatprep.subr.bf16.mxu0 0
    %321 = vmatpush1.bf16.msra.mxu0 0
    %322 = vmatprep.subr.bf16.mxu0 0
    %323 = vmatpush1.bf16.msra.mxu0 0
    %324 = vmatprep.subr.bf16.mxu0 0
    %325 = vmatpush1.bf16.msra.mxu0 0
    %326 = vmatprep.subr.bf16.mxu0 0
    %327 = vmatpush1.bf16.msra.mxu0 0
    %328 = vmatprep.subr.bf16.mxu0 0
    %329 = vmatpush1.bf16.msra.mxu0 0
    %330 = vmatprep.subr.bf16.mxu0 0
    %331 = vmatpush1.bf16.msra.mxu0 0
    %332 = vmatprep.subr.bf16.mxu0 0
    %333 = vmatpush1.bf16.msra.mxu0 0
    %334 = vmatprep.subr.bf16.mxu0 0
    %335 = vmatpush1.bf16.msra.mxu0 0
    %336 = vmatprep.mubr.bf16.mxu0 0
    %337 = vmatmul.mubr.bf16.gmra.mrb[0].mxu0 %v299
    %v338 = vpop.f32.mrb[0].mxu0
    %v339 = vadd.f32 %v279, %v338
    %v340 = vpop.f32.mrb[0].mxu0
    %v341 = vpop.f32.mrb[0].mxu0
    %v342 = vadd.f32 %v279, %v341
    %v343 = vpop.f32.mrb[0].mxu0
    %344 = vmatprep.mubr.bf16.mxu0 0
    %345 = vmatmul.mubr.bf16.gmra.mrb[0].mxu0 %v302
    %v346 = vpop.f32.mrb[0].mxu0
    %v347 = vadd.f32 %v279, %v346
    %v348 = vpop.f32.mrb[0].mxu0
    %v349 = vpop.f32.mrb[0].mxu0
    %v350 = vadd.f32 %v279, %v349
    %v351 = vpop.f32.mrb[0].mxu0
    %352 = vdwg.mxu0
    %v354 = vsel %vm149, 0.03125, 0
    %356 = vmatprep.subr.mxu0 0.0
    %357 = vmatpush1.msra.mxu0 %v262
    %358 = vmatprep.subr.mxu0 0.0
    %359 = vmatpush1.msra.mxu0 %v265
    %360 = vmatprep.subr.mxu0 0.0
    %361 = vmatpush1.msra.mxu0 %v270
    %362 = vmatprep.subr.mxu0 0.0
    %363 = vmatpush1.msra.mxu0 %v273
    %364 = vmatprep.subr.mxu0 0.0
    %365 = vmatpush1.msra.mxu0 0.0
    %366 = vmatprep.subr.mxu0 0.0
    %367 = vmatpush1.msra.mxu0 0.0
    %368 = vmatprep.subr.mxu0 0.0
    %369 = vmatpush1.msra.mxu0 0.0
    %370 = vmatprep.subr.mxu0 0.0
    %371 = vmatpush1.msra.mxu0 0.0
    %372 = vmatprep.subr.mxu0 0.0
    %373 = vmatpush1.msra.mxu0 0.0
    %374 = vmatprep.subr.mxu0 0.0
    %375 = vmatpush1.msra.mxu0 0.0
    %376 = vmatprep.subr.mxu0 0.0
    %377 = vmatpush1.msra.mxu0 0.0
    %378 = vmatprep.subr.mxu0 0.0
    %379 = vmatpush1.msra.mxu0 0.0
    %380 = vmatprep.subr.mxu0 0.0
    %381 = vmatpush1.msra.mxu0 0.0
    %382 = vmatprep.subr.mxu0 0.0
    %383 = vmatpush1.msra.mxu0 0.0
    %384 = vmatprep.subr.mxu0 0.0
    %385 = vmatpush1.msra.mxu0 0.0
    %386 = vmatprep.subr.mxu0 0.0
    %387 = vmatpush1.msra.mxu0 0.0
    %388 = vmatprep.subr.mxu0 0.0
    %389 = vmatpush1.msra.mxu0 0.0
    %390 = vmatprep.subr.mxu0 0.0
    %391 = vmatpush1.msra.mxu0 0.0
    %392 = vmatprep.subr.mxu0 0.0
    %393 = vmatpush1.msra.mxu0 0.0
    %394 = vmatprep.subr.mxu0 0.0
    %395 = vmatpush1.msra.mxu0 0.0
    %396 = vmatprep.subr.mxu0 0.0
    %397 = vmatpush1.msra.mxu0 0.0
    %398 = vmatprep.subr.mxu0 0.0
    %399 = vmatpush1.msra.mxu0 0.0
    %400 = vmatprep.subr.mxu0 0.0
    %401 = vmatpush1.msra.mxu0 0.0
    %402 = vmatprep.subr.mxu0 0.0
    %403 = vmatpush1.msra.mxu0 0.0
    %404 = vmatprep.subr.mxu0 0.0
    %405 = vmatpush1.msra.mxu0 0.0
    %406 = vmatprep.subr.mxu0 0.0
    %407 = vmatpush1.msra.mxu0 0.0
    %408 = vmatprep.subr.mxu0 0.0
    %409 = vmatpush1.msra.mxu0 0.0
    %410 = vmatprep.subr.mxu0 0.0
    %411 = vmatpush1.msra.mxu0 0.0
    %412 = vmatprep.subr.mxu0 0.0
    %413 = vmatpush1.msra.mxu0 0.0
    %414 = vmatprep.subr.mxu0 0.0
    %415 = vmatpush1.msra.mxu0 0.0
    %416 = vmatprep.subr.mxu0 0.0
    %417 = vmatpush1.msra.mxu0 0.0
    %418 = vmatprep.subr.mxu0 0.0
    %419 = vmatpush1.msra.mxu0 0.0
    %420 = vmatprep.mubr.f32.mxu0 0.0
    %421 = vmatmul.mubr.f32.gmra.mrb[0].mxu0 %v354
    %v422 = vpop.f32.mrb[0].mxu0
    %v423 = vadd.f32 0.0, %v422
    %v424 = vpop.f32.mrb[0].mxu0
    %425 = vdwg.mxu0
    %v426 = vlaneseq
    %v427 = vshrl.u32 %v426, 7
    %v428 = vsub.s32 0, %v427
    %v429 = vrot.slane %v423, %v428
    %v430 = vsub.f32 %v262, %v429
    %v431 = vsub.f32 %v265, %v429
    %v432 = vsub.f32 %v270, %v429
    %v433 = vsub.f32 %v273, %v429
    %v434 = vmul.f32 %v430, %v430
    %v435 = vmul.f32 %v431, %v431
    %v436 = vmul.f32 %v432, %v432
    %v437 = vmul.f32 %v433, %v433
    %438 = vmatprep.subr.mxu0 0.0
    %439 = vmatpush1.msra.mxu0 %v434
    %440 = vmatprep.subr.mxu0 0.0
    %441 = vmatpush1.msra.mxu0 %v435
    %442 = vmatprep.subr.mxu0 0.0
    %443 = vmatpush1.msra.mxu0 %v436
    %444 = vmatprep.subr.mxu0 0.0
    %445 = vmatpush1.msra.mxu0 %v437
    %446 = vmatprep.subr.mxu0 0.0
    %447 = vmatpush1.msra.mxu0 0.0
    %448 = vmatprep.subr.mxu0 0.0
    %449 = vmatpush1.msra.mxu0 0.0
    %450 = vmatprep.subr.mxu0 0.0
    %451 = vmatpush1.msra.mxu0 0.0
    %452 = vmatprep.subr.mxu0 0.0
    %453 = vmatpush1.msra.mxu0 0.0
    %454 = vmatprep.subr.mxu0 0.0
    %455 = vmatpush1.msra.mxu0 0.0
    %456 = vmatprep.subr.mxu0 0.0
    %457 = vmatpush1.msra.mxu0 0.0
    %458 = vmatprep.subr.mxu0 0.0
    %459 = vmatpush1.msra.mxu0 0.0
    %460 = vmatprep.subr.mxu0 0.0
    %461 = vmatpush1.msra.mxu0 0.0
    %462 = vmatprep.subr.mxu0 0.0
    %463 = vmatpush1.msra.mxu0 0.0
    %464 = vmatprep.subr.mxu0 0.0
    %465 = vmatpush1.msra.mxu0 0.0
    %466 = vmatprep.subr.mxu0 0.0
    %467 = vmatpush1.msra.mxu0 0.0
    %468 = vmatprep.subr.mxu0 0.0
    %469 = vmatpush1.msra.mxu0 0.0
    %470 = vmatprep.subr.mxu0 0.0
    %471 = vmatpush1.msra.mxu0 0.0
    %472 = vmatprep.subr.mxu0 0.0
    %473 = vmatpush1.msra.mxu0 0.0
    %474 = vmatprep.subr.mxu0 0.0
    %475 = vmatpush1.msra.mxu0 0.0
    %476 = vmatprep.subr.mxu0 0.0
    %477 = vmatpush1.msra.mxu0 0.0
    %478 = vmatprep.subr.mxu0 0.0
    %479 = vmatpush1.msra.mxu0 0.0
    %480 = vmatprep.subr.mxu0 0.0
    %481 = vmatpush1.msra.mxu0 0.0
    %482 = vmatprep.subr.mxu0 0.0
    %483 = vmatpush1.msra.mxu0 0.0
    %484 = vmatprep.subr.mxu0 0.0
    %485 = vmatpush1.msra.mxu0 0.0
    %486 = vmatprep.subr.mxu0 0.0
    %487 = vmatpush1.msra.mxu0 0.0
    %488 = vmatprep.subr.mxu0 0.0
    %489 = vmatpush1.msra.mxu0 0.0
    %490 = vmatprep.subr.mxu0 0.0
    %491 = vmatpush1.msra.mxu0 0.0
    %492 = vmatprep.subr.mxu0 0.0
    %493 = vmatpush1.msra.mxu0 0.0
    %494 = vmatprep.subr.mxu0 0.0
    %495 = vmatpush1.msra.mxu0 0.0
    %496 = vmatprep.subr.mxu0 0.0
    %497 = vmatpush1.msra.mxu0 0.0
    %498 = vmatprep.subr.mxu0 0.0
    %499 = vmatpush1.msra.mxu0 0.0
    %500 = vmatprep.subr.mxu0 0.0
    %501 = vmatpush1.msra.mxu0 0.0
    %502 = vmatprep.mubr.f32.mxu0 0.0
    %503 = vmatmul.mubr.f32.gmra.mrb[0].mxu0 %v354
    %v504 = vpop.f32.mrb[0].mxu0
    %v505 = vadd.f32 1e-05, %v504
    %v506 = vpop.f32.mrb[0].mxu0
    %507 = vdwg.mxu0
    %v508 = vrsqrt.pop %v505
    %v509 = vlaneseq
    %v510 = vshrl.u32 %v509, 7
    %v511 = vsub.s32 0, %v510
    %v512 = vrot.slane %v508, %v511
    %v513 = vmul.f32 %v430, %v512
    %v514 = vmul.f32 %v431, %v512
    %v515 = vmul.f32 %v432, %v512
    %v516 = vmul.f32 %v433, %v512
    %v517 = vlaneseq
    %v518 = vshrl.u32 %v517, 7
    %v519 = vsub.s32 4, %v518
    %v520 = vrot.slane %v57, %v519
    %v521 = vmul.f32 %v513, %v520
    %v522 = vmul.f32 %v514, %v520
    %v523 = vmul.f32 %v515, %v520
    %v524 = vmul.f32 %v516, %v520
    %v525 = vlaneseq
    %v526 = vshrl.u32 %v525, 7
    %v527 = vsub.s32 7, %v526
    %v528 = vrot.slane %v57, %v527
    %v529 = vadd.f32 %v521, %v528
    %v530 = vadd.f32 %v522, %v528
    %v531 = vadd.f32 %v523, %v528
    %v532 = vadd.f32 %v524, %v528
    %v533 = vmax.f32 %v529, 0.0
    %v534 = vmax.f32 %v530, 0.0
    %v535 = vmax.f32 %v531, 0.0
    %v536 = vmax.f32 %v532, 0.0
    %v537 = vadd.f32 %v533, %v121
    %v538 = vadd.f32 %v534, %v124
    %v539 = vadd.f32 %v535, %v129
    %v540 = vadd.f32 %v536, %v132
    %541 = vmatprep.subr.mxu0 0.0
    %542 = vmatpush1.msra.mxu0 %v339
    %543 = vmatprep.subr.mxu0 0.0
    %544 = vmatpush1.msra.mxu0 %v342
    %545 = vmatprep.subr.mxu0 0.0
    %546 = vmatpush1.msra.mxu0 %v347
    %547 = vmatprep.subr.mxu0 0.0
    %548 = vmatpush1.msra.mxu0 %v350
    %549 = vmatprep.subr.mxu0 0.0
    %550 = vmatpush1.msra.mxu0 0.0
    %551 = vmatprep.subr.mxu0 0.0
    %552 = vmatpush1.msra.mxu0 0.0
    %553 = vmatprep.subr.mxu0 0.0
    %554 = vmatpush1.msra.mxu0 0.0
    %555 = vmatprep.subr.mxu0 0.0
    %556 = vmatpush1.msra.mxu0 0.0
    %557 = vmatprep.subr.mxu0 0.0
    %558 = vmatpush1.msra.mxu0 0.0
    %559 = vmatprep.subr.mxu0 0.0
    %560 = vmatpush1.msra.mxu0 0.0
    %561 = vmatprep.subr.mxu0 0.0
    %562 = vmatpush1.msra.mxu0 0.0
    %563 = vmatprep.subr.mxu0 0.0
    %564 = vmatpush1.msra.mxu0 0.0
    %565 = vmatprep.subr.mxu0 0.0
    %566 = vmatpush1.msra.mxu0 0.0
    %567 = vmatprep.subr.mxu0 0.0
    %568 = vmatpush1.msra.mxu0 0.0
    %569 = vmatprep.subr.mxu0 0.0
    %570 = vmatpush1.msra.mxu0 0.0
    %571 = vmatprep.subr.mxu0 0.0
    %572 = vmatpush1.msra.mxu0 0.0
    %573 = vmatprep.subr.mxu0 0.0
    %574 = vmatpush1.msra.mxu0 0.0
    %575 = vmatprep.subr.mxu0 0.0
    %576 = vmatpush1.msra.mxu0 0.0
    %577 = vmatprep.subr.mxu0 0.0
    %578 = vmatpush1.msra.mxu0 0.0
    %579 = vmatprep.subr.mxu0 0.0
    %580 = vmatpush1.msra.mxu0 0.0
    %581 = vmatprep.subr.mxu0 0.0
    %582 = vmatpush1.msra.mxu0 0.0
    %583 = vmatprep.subr.mxu0 0.0
    %584 = vmatpush1.msra.mxu0 0.0
    %585 = vmatprep.subr.mxu0 0.0
    %586 = vmatpush1.msra.mxu0 0.0
    %587 = vmatprep.subr.mxu0 0.0
    %588 = vmatpush1.msra.mxu0 0.0
    %589 = vmatprep.subr.mxu0 0.0
    %590 = vmatpush1.msra.mxu0 0.0
    %591 = vmatprep.subr.mxu0 0.0
    %592 = vmatpush1.msra.mxu0 0.0
    %593 = vmatprep.subr.mxu0 0.0
    %594 = vmatpush1.msra.mxu0 0.0
    %595 = vmatprep.subr.mxu0 0.0
    %596 = vmatpush1.msra.mxu0 0.0
    %597 = vmatprep.subr.mxu0 0.0
    %598 = vmatpush1.msra.mxu0 0.0
    %599 = vmatprep.subr.mxu0 0.0
    %600 = vmatpush1.msra.mxu0 0.0
    %601 = vmatprep.subr.mxu0 0.0
    %602 = vmatpush1.msra.mxu0 0.0
    %603 = vmatprep.subr.mxu0 0.0
    %604 = vmatpush1.msra.mxu0 0.0
    %605 = vmatprep.mubr.f32.mxu0 0.0
    %606 = vmatmul.mubr.f32.gmra.mrb[0].mxu0 %v354
    %v607 = vpop.f32.mrb[0].mxu0
    %v608 = vadd.f32 0.0, %v607
    %v609 = vpop.f32.mrb[0].mxu0
    %610 = vdwg.mxu0
    %v611 = vlaneseq
    %v612 = vshrl.u32 %v611, 7
    %v613 = vsub.s32 0, %v612
    %v614 = vrot.slane %v608, %v613
    %v615 = vsub.f32 %v339, %v614
    %v616 = vsub.f32 %v342, %v614
    %v617 = vsub.f32 %v347, %v614
    %v618 = vsub.f32 %v350, %v614
    %v619 = vmul.f32 %v615, %v615
    %v620 = vmul.f32 %v616, %v616
    %v621 = vmul.f32 %v617, %v617
    %v622 = vmul.f32 %v618, %v618
    %623 = vmatprep.subr.mxu0 0.0
    %624 = vmatpush1.msra.mxu0 %v619
    %625 = vmatprep.subr.mxu0 0.0
    %626 = vmatpush1.msra.mxu0 %v620
    %627 = vmatprep.subr.mxu0 0.0
    %628 = vmatpush1.msra.mxu0 %v621
    %629 = vmatprep.subr.mxu0 0.0
    %630 = vmatpush1.msra.mxu0 %v622
    %631 = vmatprep.subr.mxu0 0.0
    %632 = vmatpush1.msra.mxu0 0.0
    %633 = vmatprep.subr.mxu0 0.0
    %634 = vmatpush1.msra.mxu0 0.0
    %635 = vmatprep.subr.mxu0 0.0
    %636 = vmatpush1.msra.mxu0 0.0
    %637 = vmatprep.subr.mxu0 0.0
    %638 = vmatpush1.msra.mxu0 0.0
    %639 = vmatprep.subr.mxu0 0.0
    %640 = vmatpush1.msra.mxu0 0.0
    %641 = vmatprep.subr.mxu0 0.0
    %642 = vmatpush1.msra.mxu0 0.0
    %643 = vmatprep.subr.mxu0 0.0
    %644 = vmatpush1.msra.mxu0 0.0
    %645 = vmatprep.subr.mxu0 0.0
    %646 = vmatpush1.msra.mxu0 0.0
    %647 = vmatprep.subr.mxu0 0.0
    %648 = vmatpush1.msra.mxu0 0.0
    %649 = vmatprep.subr.mxu0 0.0
    %650 = vmatpush1.msra.mxu0 0.0
    %651 = vmatprep.subr.mxu0 0.0
    %652 = vmatpush1.msra.mxu0 0.0
    %653 = vmatprep.subr.mxu0 0.0
    %654 = vmatpush1.msra.mxu0 0.0
    %655 = vmatprep.subr.mxu0 0.0
    %656 = vmatpush1.msra.mxu0 0.0
    %657 = vmatprep.subr.mxu0 0.0
    %658 = vmatpush1.msra.mxu0 0.0
    %659 = vmatprep.subr.mxu0 0.0
    %660 = vmatpush1.msra.mxu0 0.0
    %661 = vmatprep.subr.mxu0 0.0
    %662 = vmatpush1.msra.mxu0 0.0
    %663 = vmatprep.subr.mxu0 0.0
    %664 = vmatpush1.msra.mxu0 0.0
    %665 = vmatprep.subr.mxu0 0.0
    %666 = vmatpush1.msra.mxu0 0.0
    %667 = vmatprep.subr.mxu0 0.0
    %668 = vmatpush1.msra.mxu0 0.0
    %669 = vmatprep.subr.mxu0 0.0
    %670 = vmatpush1.msra.mxu0 0.0
    %671 = vmatprep.subr.mxu0 0.0
    %672 = vmatpush1.msra.mxu0 0.0
    %673 = vmatprep.subr.mxu0 0.0
    %674 = vmatpush1.msra.mxu0 0.0
    %675 = vmatprep.subr.mxu0 0.0
    %676 = vmatpush1.msra.mxu0 0.0
    %677 = vmatprep.subr.mxu0 0.0
    %678 = vmatpush1.msra.mxu0 0.0
    %679 = vmatprep.subr.mxu0 0.0
    %680 = vmatpush1.msra.mxu0 0.0
    %681 = vmatprep.subr.mxu0 0.0
    %682 = vmatpush1.msra.mxu0 0.0
    %683 = vmatprep.subr.mxu0 0.0
    %684 = vmatpush1.msra.mxu0 0.0
    %685 = vmatprep.subr.mxu0 0.0
    %686 = vmatpush1.msra.mxu0 0.0
    %687 = vmatprep.mubr.f32.mxu0 0.0
    %688 = vmatmul.mubr.f32.gmra.mrb[0].mxu0 %v354
    %v689 = vpop.f32.mrb[0].mxu0
    %v690 = vadd.f32 1e-05, %v689
    %v691 = vpop.f32.mrb[0].mxu0
    %692 = vdwg.mxu0
    %v693 = vrsqrt.pop %v690
    %v694 = vlaneseq
    %v695 = vshrl.u32 %v694, 7
    %v696 = vsub.s32 0, %v695
    %v697 = vrot.slane %v693, %v696
    %v698 = vmul.f32 %v615, %v697
    %v699 = vmul.f32 %v616, %v697
    %v700 = vmul.f32 %v617, %v697
    %v701 = vmul.f32 %v618, %v697
    %v702 = vlaneseq
    %v703 = vshrl.u32 %v702, 7
    %v704 = vsub.s32 3, %v703
    %v705 = vrot.slane %v58, %v704
    %v706 = vmul.f32 %v698, %v705
    %v707 = vmul.f32 %v699, %v705
    %v708 = vmul.f32 %v700, %v705
    %v709 = vmul.f32 %v701, %v705
    %v710 = vlaneseq
    %v711 = vshrl.u32 %v710, 7
    %v712 = vsub.s32 4, %v711
    %v713 = vrot.slane %v58, %v712
    %v714 = vadd.f32 %v706, %v713
    %v715 = vadd.f32 %v707, %v713
    %v716 = vadd.f32 %v708, %v713
    %v717 = vadd.f32 %v709, %v713
    %v718 = vmax.f32 %v714, 0.0
    %v719 = vmax.f32 %v715, 0.0
    %v720 = vmax.f32 %v716, 0.0
    %v721 = vmax.f32 %v717, 0.0
    %v722 = vadd.f32 %v718, %v121
    %v723 = vadd.f32 %v719, %v124
    %v724 = vadd.f32 %v720, %v129
    %v725 = vadd.f32 %v721, %v132
    %v726 = vpack.c.bf16 %v538, %v537
    %v727 = vpack.c.bf16 %v540, %v539
    %v732 = vunpack.c.l.b16 %v37
    %v733 = vunpack.c.l.b16 %v38
    %v734 = vunpack.c.l.b16 %v39
    %v735 = vunpack.c.l.b16 %v40
    %v736 = vpack.c.b16 %v733, %v732
    %v737 = vpack.c.b16 %v735, %v734
    %v741 = vsel %vm149, %v726, 0
    %v744 = vsel %vm149, %v727, 0
    %746 = vmatprep.subr.bf16.mxu0 0
    %747 = vmatpush1.bf16.msra.mxu0 %v736
    %748 = vmatprep.subr.bf16.mxu0 0
    %749 = vmatpush1.bf16.msra.mxu0 %v737
    %750 = vmatprep.subr.bf16.mxu0 0
    %751 = vmatpush1.bf16.msra.mxu0 0
    %752 = vmatprep.subr.bf16.mxu0 0
    %753 = vmatpush1.bf16.msra.mxu0 0
    %754 = vmatprep.subr.bf16.mxu0 0
    %755 = vmatpush1.bf16.msra.mxu0 0
    %756 = vmatprep.subr.bf16.mxu0 0
    %757 = vmatpush1.bf16.msra.mxu0 0
    %758 = vmatprep.subr.bf16.mxu0 0
    %759 = vmatpush1.bf16.msra.mxu0 0
    %760 = vmatprep.subr.bf16.mxu0 0
    %761 = vmatpush1.bf16.msra.mxu0 0
    %762 = vmatprep.subr.bf16.mxu0 0
    %763 = vmatpush1.bf16.msra.mxu0 0
    %764 = vmatprep.subr.bf16.mxu0 0
    %765 = vmatpush1.bf16.msra.mxu0 0
    %766 = vmatprep.subr.bf16.mxu0 0
    %767 = vmatpush1.bf16.msra.mxu0 0
    %768 = vmatprep.subr.bf16.mxu0 0
    %769 = vmatpush1.bf16.msra.mxu0 0
    %770 = vmatprep.subr.bf16.mxu0 0
    %771 = vmatpush1.bf16.msra.mxu0 0
    %772 = vmatprep.subr.bf16.mxu0 0
    %773 = vmatpush1.bf16.msra.mxu0 0
    %774 = vmatprep.subr.bf16.mxu0 0
    %775 = vmatpush1.bf16.msra.mxu0 0
    %776 = vmatprep.subr.bf16.mxu0 0
    %777 = vmatpush1.bf16.msra.mxu0 0
    %778 = vmatprep.mubr.bf16.mxu0 0
    %779 = vmatmul.mubr.bf16.gmra.mrb[0].mxu0 %v741
    %v780 = vpop.f32.mrb[0].mxu0
    %v781 = vadd.f32 0.0, %v780
    %v782 = vpop.f32.mrb[0].mxu0
    %v783 = vpop.f32.mrb[0].mxu0
    %v784 = vadd.f32 0.0, %v783
    %v785 = vpop.f32.mrb[0].mxu0
    %786 = vmatprep.mubr.bf16.mxu0 0
    %787 = vmatmul.mubr.bf16.gmra.mrb[0].mxu0 %v744
    %v788 = vpop.f32.mrb[0].mxu0
    %v789 = vadd.f32 0.0, %v788
    %v790 = vpop.f32.mrb[0].mxu0
    %v791 = vpop.f32.mrb[0].mxu0
    %v792 = vadd.f32 0.0, %v791
    %v793 = vpop.f32.mrb[0].mxu0
    %794 = vdwg.mxu0
    %v795 = vpack.c.bf16 %v784, %v781
    %v796 = vpack.c.bf16 %v792, %v789
    %v797 = vlaneseq
    %v798 = vshrl.u32 %v797, 7
    %v799 = vsub.s32 2, %v798
    %v800 = vrot.slane %v57, %v799
    %801 = vmatprep.subr.bf16.mxu0 0
    %802 = vmatpush1.bf16.msra.mxu0 %v795
    %803 = vmatprep.subr.bf16.mxu0 0
    %804 = vmatpush1.bf16.msra.mxu0 %v796
    %805 = vmatprep.subr.bf16.mxu0 0
    %806 = vmatpush1.bf16.msra.mxu0 0
    %807 = vmatprep.subr.bf16.mxu0 0
    %808 = vmatpush1.bf16.msra.mxu0 0
    %809 = vmatprep.subr.bf16.mxu0 0
    %810 = vmatpush1.bf16.msra.mxu0 0
    %811 = vmatprep.subr.bf16.mxu0 0
    %812 = vmatpush1.bf16.msra.mxu0 0
    %813 = vmatprep.subr.bf16.mxu0 0
    %814 = vmatpush1.bf16.msra.mxu0 0
    %815 = vmatprep.subr.bf16.mxu0 0
    %816 = vmatpush1.bf16.msra.mxu0 0
    %817 = vmatprep.subr.bf16.mxu0 0
    %818 = vmatpush1.bf16.msra.mxu0 0
    %819 = vmatprep.subr.bf16.mxu0 0
    %820 = vmatpush1.bf16.msra.mxu0 0
    %821 = vmatprep.subr.bf16.mxu0 0
    %822 = vmatpush1.bf16.msra.mxu0 0
    %823 = vmatprep.subr.bf16.mxu0 0
    %824 = vmatpush1.bf16.msra.mxu0 0
    %825 = vmatprep.subr.bf16.mxu0 0
    %826 = vmatpush1.bf16.msra.mxu0 0
    %827 = vmatprep.subr.bf16.mxu0 0
    %828 = vmatpush1.bf16.msra.mxu0 0
    %829 = vmatprep.subr.bf16.mxu0 0
    %830 = vmatpush1.bf16.msra.mxu0 0
    %831 = vmatprep.subr.bf16.mxu0 0
    %832 = vmatpush1.bf16.msra.mxu0 0
    %833 = vmatprep.mubr.bf16.mxu0 0
    %834 = vmatmul.mubr.bf16.gmra.mrb[0].mxu0 %v222
    %v835 = vpop.f32.mrb[0].mxu0
    %v836 = vadd.f32 %v800, %v835
    %v837 = vpop.f32.mrb[0].mxu0
    %v838 = vpop.f32.mrb[0].mxu0
    %v839 = vadd.f32 %v800, %v838
    %v840 = vpop.f32.mrb[0].mxu0
    %841 = vmatprep.mubr.bf16.mxu0 0
    %842 = vmatmul.mubr.bf16.gmra.mrb[0].mxu0 %v225
    %v843 = vpop.f32.mrb[0].mxu0
    %v844 = vadd.f32 %v800, %v843
    %v845 = vpop.f32.mrb[0].mxu0
    %v846 = vpop.f32.mrb[0].mxu0
    %v847 = vadd.f32 %v800, %v846
    %v848 = vpop.f32.mrb[0].mxu0
    %849 = vdwg.mxu0
    %850 = vmatprep.subr.mxu0 0.0
    %851 = vmatpush1.msra.mxu0 %v836
    %852 = vmatprep.subr.mxu0 0.0
    %853 = vmatpush1.msra.mxu0 %v839
    %854 = vmatprep.subr.mxu0 0.0
    %855 = vmatpush1.msra.mxu0 %v844
    %856 = vmatprep.subr.mxu0 0.0
    %857 = vmatpush1.msra.mxu0 %v847
    %858 = vmatprep.subr.mxu0 0.0
    %859 = vmatpush1.msra.mxu0 0.0
    %860 = vmatprep.subr.mxu0 0.0
    %861 = vmatpush1.msra.mxu0 0.0
    %862 = vmatprep.subr.mxu0 0.0
    %863 = vmatpush1.msra.mxu0 0.0
    %864 = vmatprep.subr.mxu0 0.0
    %865 = vmatpush1.msra.mxu0 0.0
    %866 = vmatprep.subr.mxu0 0.0
    %867 = vmatpush1.msra.mxu0 0.0
    %868 = vmatprep.subr.mxu0 0.0
    %869 = vmatpush1.msra.mxu0 0.0
    %870 = vmatprep.subr.mxu0 0.0
    %871 = vmatpush1.msra.mxu0 0.0
    %872 = vmatprep.subr.mxu0 0.0
    %873 = vmatpush1.msra.mxu0 0.0
    %874 = vmatprep.subr.mxu0 0.0
    %875 = vmatpush1.msra.mxu0 0.0
    %876 = vmatprep.subr.mxu0 0.0
    %877 = vmatpush1.msra.mxu0 0.0
    %878 = vmatprep.subr.mxu0 0.0
    %879 = vmatpush1.msra.mxu0 0.0
    %880 = vmatprep.subr.mxu0 0.0
    %881 = vmatpush1.msra.mxu0 0.0
    %882 = vmatprep.subr.mxu0 0.0
    %883 = vmatpush1.msra.mxu0 0.0
    %884 = vmatprep.subr.mxu0 0.0
    %885 = vmatpush1.msra.mxu0 0.0
    %886 = vmatprep.subr.mxu0 0.0
    %887 = vmatpush1.msra.mxu0 0.0
    %888 = vmatprep.subr.mxu0 0.0
    %889 = vmatpush1.msra.mxu0 0.0
    %890 = vmatprep.subr.mxu0 0.0
    %891 = vmatpush1.msra.mxu0 0.0
    %892 = vmatprep.subr.mxu0 0.0
    %893 = vmatpush1.msra.mxu0 0.0
    %894 = vmatprep.subr.mxu0 0.0
    %895 = vmatpush1.msra.mxu0 0.0
    %896 = vmatprep.subr.mxu0 0.0
    %897 = vmatpush1.msra.mxu0 0.0
    %898 = vmatprep.subr.mxu0 0.0
    %899 = vmatpush1.msra.mxu0 0.0
    %900 = vmatprep.subr.mxu0 0.0
    %901 = vmatpush1.msra.mxu0 0.0
    %902 = vmatprep.subr.mxu0 0.0
    %903 = vmatpush1.msra.mxu0 0.0
    %904 = vmatprep.subr.mxu0 0.0
    %905 = vmatpush1.msra.mxu0 0.0
    %906 = vmatprep.subr.mxu0 0.0
    %907 = vmatpush1.msra.mxu0 0.0
    %908 = vmatprep.subr.mxu0 0.0
    %909 = vmatpush1.msra.mxu0 0.0
    %910 = vmatprep.subr.mxu0 0.0
    %911 = vmatpush1.msra.mxu0 0.0
    %912 = vmatprep.subr.mxu0 0.0
    %913 = vmatpush1.msra.mxu0 0.0
    %914 = vmatprep.mubr.f32.mxu0 0.0
    %915 = vmatmul.mubr.f32.gmra.mrb[0].mxu0 %v354
    %v916 = vpop.f32.mrb[0].mxu0
    %v917 = vadd.f32 0.0, %v916
    %v918 = vpop.f32.mrb[0].mxu0
    %919 = vdwg.mxu0
    %v920 = vlaneseq
    %v921 = vshrl.u32 %v920, 7
    %v922 = vsub.s32 0, %v921
    %v923 = vrot.slane %v917, %v922
    %v924 = vsub.f32 %v836, %v923
    %v925 = vsub.f32 %v839, %v923
    %v926 = vsub.f32 %v844, %v923
    %v927 = vsub.f32 %v847, %v923
    %v928 = vmul.f32 %v924, %v924
    %v929 = vmul.f32 %v925, %v925
    %v930 = vmul.f32 %v926, %v926
    %v931 = vmul.f32 %v927, %v927
    %932 = vmatprep.subr.mxu0 0.0
    %933 = vmatpush1.msra.mxu0 %v928
    %934 = vmatprep.subr.mxu0 0.0
    %935 = vmatpush1.msra.mxu0 %v929
    %936 = vmatprep.subr.mxu0 0.0
    %937 = vmatpush1.msra.mxu0 %v930
    %938 = vmatprep.subr.mxu0 0.0
    %939 = vmatpush1.msra.mxu0 %v931
    %940 = vmatprep.subr.mxu0 0.0
    %941 = vmatpush1.msra.mxu0 0.0
    %942 = vmatprep.subr.mxu0 0.0
    %943 = vmatpush1.msra.mxu0 0.0
    %944 = vmatprep.subr.mxu0 0.0
    %945 = vmatpush1.msra.mxu0 0.0
    %946 = vmatprep.subr.mxu0 0.0
    %947 = vmatpush1.msra.mxu0 0.0
    %948 = vmatprep.subr.mxu0 0.0
    %949 = vmatpush1.msra.mxu0 0.0
    %950 = vmatprep.subr.mxu0 0.0
    %951 = vmatpush1.msra.mxu0 0.0
    %952 = vmatprep.subr.mxu0 0.0
    %953 = vmatpush1.msra.mxu0 0.0
    %954 = vmatprep.subr.mxu0 0.0
    %955 = vmatpush1.msra.mxu0 0.0
    %956 = vmatprep.subr.mxu0 0.0
    %957 = vmatpush1.msra.mxu0 0.0
    %958 = vmatprep.subr.mxu0 0.0
    %959 = vmatpush1.msra.mxu0 0.0
    %960 = vmatprep.subr.mxu0 0.0
    %961 = vmatpush1.msra.mxu0 0.0
    %962 = vmatprep.subr.mxu0 0.0
    %963 = vmatpush1.msra.mxu0 0.0
    %964 = vmatprep.subr.mxu0 0.0
    %965 = vmatpush1.msra.mxu0 0.0
    %966 = vmatprep.subr.mxu0 0.0
    %967 = vmatpush1.msra.mxu0 0.0
    %968 = vmatprep.subr.mxu0 0.0
    %969 = vmatpush1.msra.mxu0 0.0
    %970 = vmatprep.subr.mxu0 0.0
    %971 = vmatpush1.msra.mxu0 0.0
    %972 = vmatprep.subr.mxu0 0.0
    %973 = vmatpush1.msra.mxu0 0.0
    %974 = vmatprep.subr.mxu0 0.0
    %975 = vmatpush1.msra.mxu0 0.0
    %976 = vmatprep.subr.mxu0 0.0
    %977 = vmatpush1.msra.mxu0 0.0
    %978 = vmatprep.subr.mxu0 0.0
    %979 = vmatpush1.msra.mxu0 0.0
    %980 = vmatprep.subr.mxu0 0.0
    %981 = vmatpush1.msra.mxu0 0.0
    %982 = vmatprep.subr.mxu0 0.0
    %983 = vmatpush1.msra.mxu0 0.0
    %984 = vmatprep.subr.mxu0 0.0
    %985 = vmatpush1.msra.mxu0 0.0
    %986 = vmatprep.subr.mxu0 0.0
    %987 = vmatpush1.msra.mxu0 0.0
    %988 = vmatprep.subr.mxu0 0.0
    %989 = vmatpush1.msra.mxu0 0.0
    %990 = vmatprep.subr.mxu0 0.0
    %991 = vmatpush1.msra.mxu0 0.0
    %992 = vmatprep.subr.mxu0 0.0
    %993 = vmatpush1.msra.mxu0 0.0
    %994 = vmatprep.subr.mxu0 0.0
    %995 = vmatpush1.msra.mxu0 0.0
    %996 = vmatprep.mubr.f32.mxu0 0.0
    %997 = vmatmul.mubr.f32.gmra.mrb[0].mxu0 %v354
    %v998 = vpop.f32.mrb[0].mxu0
    %v999 = vadd.f32 1e-05, %v998
    %v1000 = vpop.f32.mrb[0].mxu0
    %1001 = vdwg.mxu0
    %v1002 = vrsqrt.pop %v999
    %v1003 = vlaneseq
    %v1004 = vshrl.u32 %v1003, 7
    %v1005 = vsub.s32 0, %v1004
    %v1006 = vrot.slane %v1002, %v1005
    %v1007 = vmul.f32 %v924, %v1006
    %v1008 = vmul.f32 %v925, %v1006
    %v1009 = vmul.f32 %v926, %v1006
    %v1010 = vmul.f32 %v927, %v1006
    %v1011 = vlaneseq
    %v1012 = vshrl.u32 %v1011, 7
    %v1013 = vsub.s32 5, %v1012
    %v1014 = vrot.slane %v57, %v1013
    %v1015 = vmul.f32 %v1007, %v1014
    %v1016 = vmul.f32 %v1008, %v1014
    %v1017 = vmul.f32 %v1009, %v1014
    %v1018 = vmul.f32 %v1010, %v1014
    %v1019 = vlaneseq
    %v1020 = vshrl.u32 %v1019, 7
    %v1021 = vsub.s32 0, %v1020
    %v1022 = vrot.slane %v58, %v1021
    %v1023 = vadd.f32 %v1015, %v1022
    %v1024 = vadd.f32 %v1016, %v1022
    %v1025 = vadd.f32 %v1017, %v1022
    %v1026 = vadd.f32 %v1018, %v1022
    %v1027 = vmax.f32 %v1023, 0.0
    %v1028 = vmax.f32 %v1024, 0.0
    %v1029 = vmax.f32 %v1025, 0.0
    %v1030 = vmax.f32 %v1026, 0.0
    %v1031 = vadd.f32 %v1027, %v537
    %v1032 = vadd.f32 %v1028, %v538
    %v1033 = vadd.f32 %v1029, %v539
    %v1034 = vadd.f32 %v1030, %v540
    %v1035 = vpack.c.bf16 %v1032, %v1031
    %v1036 = vpack.c.bf16 %v1034, %v1033
    %v1041 = vunpack.c.l.b16 %v41
    %v1042 = vunpack.c.l.b16 %v42
    %v1043 = vunpack.c.l.b16 %v43
    %v1044 = vunpack.c.l.b16 %v44
    %v1045 = vpack.c.b16 %v1042, %v1041
    %v1046 = vpack.c.b16 %v1044, %v1043
    %v1050 = vsel %vm149, %v1035, 0
    %v1053 = vsel %vm149, %v1036, 0
    %1055 = vmatprep.subr.bf16.mxu0 0
    %1056 = vmatpush1.bf16.msra.mxu0 %v1045
    %1057 = vmatprep.subr.bf16.mxu0 0
    %1058 = vmatpush1.bf16.msra.mxu0 %v1046
    %1059 = vmatprep.subr.bf16.mxu0 0
    %1060 = vmatpush1.bf16.msra.mxu0 0
    %1061 = vmatprep.subr.bf16.mxu0 0
    %1062 = vmatpush1.bf16.msra.mxu0 0
    %1063 = vmatprep.subr.bf16.mxu0 0
    %1064 = vmatpush1.bf16.msra.mxu0 0
    %1065 = vmatprep.subr.bf16.mxu0 0
    %1066 = vmatpush1.bf16.msra.mxu0 0
    %1067 = vmatprep.subr.bf16.mxu0 0
    %1068 = vmatpush1.bf16.msra.mxu0 0
    %1069 = vmatprep.subr.bf16.mxu0 0
    %1070 = vmatpush1.bf16.msra.mxu0 0
    %1071 = vmatprep.subr.bf16.mxu0 0
    %1072 = vmatpush1.bf16.msra.mxu0 0
    %1073 = vmatprep.subr.bf16.mxu0 0
    %1074 = vmatpush1.bf16.msra.mxu0 0
    %1075 = vmatprep.subr.bf16.mxu0 0
    %1076 = vmatpush1.bf16.msra.mxu0 0
    %1077 = vmatprep.subr.bf16.mxu0 0
    %1078 = vmatpush1.bf16.msra.mxu0 0
    %1079 = vmatprep.subr.bf16.mxu0 0
    %1080 = vmatpush1.bf16.msra.mxu0 0
    %1081 = vmatprep.subr.bf16.mxu0 0
    %1082 = vmatpush1.bf16.msra.mxu0 0
    %1083 = vmatprep.subr.bf16.mxu0 0
    %1084 = vmatpush1.bf16.msra.mxu0 0
    %1085 = vmatprep.subr.bf16.mxu0 0
    %1086 = vmatpush1.bf16.msra.mxu0 0
    %1087 = vmatprep.mubr.bf16.mxu0 0
    %1088 = vmatmul.mubr.bf16.gmra.mrb[0].mxu0 %v1050
    %v1089 = vpop.f32.mrb[0].mxu0
    %v1090 = vadd.f32 0.0, %v1089
    %v1091 = vpop.f32.mrb[0].mxu0
    %v1092 = vpop.f32.mrb[0].mxu0
    %v1093 = vadd.f32 0.0, %v1092
    %v1094 = vpop.f32.mrb[0].mxu0
    %1095 = vmatprep.mubr.bf16.mxu0 0
    %1096 = vmatmul.mubr.bf16.gmra.mrb[0].mxu0 %v1053
    %v1097 = vpop.f32.mrb[0].mxu0
    %v1098 = vadd.f32 0.0, %v1097
    %v1099 = vpop.f32.mrb[0].mxu0
    %v1100 = vpop.f32.mrb[0].mxu0
    %v1101 = vadd.f32 0.0, %v1100
    %v1102 = vpop.f32.mrb[0].mxu0
    %1103 = vdwg.mxu0
    %v1104 = vpack.c.bf16 %v1093, %v1090
    %v1105 = vpack.c.bf16 %v1101, %v1098
    %v1106 = vlaneseq
    %v1107 = vshrl.u32 %v1106, 7
    %v1108 = vsub.s32 3, %v1107
    %v1109 = vrot.slane %v57, %v1108
    %1110 = vmatprep.subr.bf16.mxu0 0
    %1111 = vmatpush1.bf16.msra.mxu0 %v1104
    %1112 = vmatprep.subr.bf16.mxu0 0
    %1113 = vmatpush1.bf16.msra.mxu0 %v1105
    %1114 = vmatprep.subr.bf16.mxu0 0
    %1115 = vmatpush1.bf16.msra.mxu0 0
    %1116 = vmatprep.subr.bf16.mxu0 0
    %1117 = vmatpush1.bf16.msra.mxu0 0
    %1118 = vmatprep.subr.bf16.mxu0 0
    %1119 = vmatpush1.bf16.msra.mxu0 0
    %1120 = vmatprep.subr.bf16.mxu0 0
    %1121 = vmatpush1.bf16.msra.mxu0 0
    %1122 = vmatprep.subr.bf16.mxu0 0
    %1123 = vmatpush1.bf16.msra.mxu0 0
    %1124 = vmatprep.subr.bf16.mxu0 0
    %1125 = vmatpush1.bf16.msra.mxu0 0
    %1126 = vmatprep.subr.bf16.mxu0 0
    %1127 = vmatpush1.bf16.msra.mxu0 0
    %1128 = vmatprep.subr.bf16.mxu0 0
    %1129 = vmatpush1.bf16.msra.mxu0 0
    %1130 = vmatprep.subr.bf16.mxu0 0
    %1131 = vmatpush1.bf16.msra.mxu0 0
    %1132 = vmatprep.subr.bf16.mxu0 0
    %1133 = vmatpush1.bf16.msra.mxu0 0
    %1134 = vmatprep.subr.bf16.mxu0 0
    %1135 = vmatpush1.bf16.msra.mxu0 0
    %1136 = vmatprep.subr.bf16.mxu0 0
    %1137 = vmatpush1.bf16.msra.mxu0 0
    %1138 = vmatprep.subr.bf16.mxu0 0
    %1139 = vmatpush1.bf16.msra.mxu0 0
    %1140 = vmatprep.subr.bf16.mxu0 0
    %1141 = vmatpush1.bf16.msra.mxu0 0
    %1142 = vmatprep.mubr.bf16.mxu0 0
    %1143 = vmatmul.mubr.bf16.gmra.mrb[0].mxu0 %v222
    %v1144 = vpop.f32.mrb[0].mxu0
    %v1145 = vadd.f32 %v1109, %v1144
    %v1146 = vpop.f32.mrb[0].mxu0
    %v1147 = vpop.f32.mrb[0].mxu0
    %v1148 = vadd.f32 %v1109, %v1147
    %v1149 = vpop.f32.mrb[0].mxu0
    %1150 = vmatprep.mubr.bf16.mxu0 0
    %1151 = vmatmul.mubr.bf16.gmra.mrb[0].mxu0 %v225
    %v1152 = vpop.f32.mrb[0].mxu0
    %v1153 = vadd.f32 %v1109, %v1152
    %v1154 = vpop.f32.mrb[0].mxu0
    %v1155 = vpop.f32.mrb[0].mxu0
    %v1156 = vadd.f32 %v1109, %v1155
    %v1157 = vpop.f32.mrb[0].mxu0
    %1158 = vdwg.mxu0
    %1159 = vmatprep.subr.mxu0 0.0
    %1160 = vmatpush1.msra.mxu0 %v1145
    %1161 = vmatprep.subr.mxu0 0.0
    %1162 = vmatpush1.msra.mxu0 %v1148
    %1163 = vmatprep.subr.mxu0 0.0
    %1164 = vmatpush1.msra.mxu0 %v1153
    %1165 = vmatprep.subr.mxu0 0.0
    %1166 = vmatpush1.msra.mxu0 %v1156
    %1167 = vmatprep.subr.mxu0 0.0
    %1168 = vmatpush1.msra.mxu0 0.0
    %1169 = vmatprep.subr.mxu0 0.0
    %1170 = vmatpush1.msra.mxu0 0.0
    %1171 = vmatprep.subr.mxu0 0.0
    %1172 = vmatpush1.msra.mxu0 0.0
    %1173 = vmatprep.subr.mxu0 0.0
    %1174 = vmatpush1.msra.mxu0 0.0
    %1175 = vmatprep.subr.mxu0 0.0
    %1176 = vmatpush1.msra.mxu0 0.0
    %1177 = vmatprep.subr.mxu0 0.0
    %1178 = vmatpush1.msra.mxu0 0.0
    %1179 = vmatprep.subr.mxu0 0.0
    %1180 = vmatpush1.msra.mxu0 0.0
    %1181 = vmatprep.subr.mxu0 0.0
    %1182 = vmatpush1.msra.mxu0 0.0
    %1183 = vmatprep.subr.mxu0 0.0
    %1184 = vmatpush1.msra.mxu0 0.0
    %1185 = vmatprep.subr.mxu0 0.0
    %1186 = vmatpush1.msra.mxu0 0.0
    %1187 = vmatprep.subr.mxu0 0.0
    %1188 = vmatpush1.msra.mxu0 0.0
    %1189 = vmatprep.subr.mxu0 0.0
    %1190 = vmatpush1.msra.mxu0 0.0
    %1191 = vmatprep.subr.mxu0 0.0
    %1192 = vmatpush1.msra.mxu0 0.0
    %1193 = vmatprep.subr.mxu0 0.0
    %1194 = vmatpush1.msra.mxu0 0.0
    %1195 = vmatprep.subr.mxu0 0.0
    %1196 = vmatpush1.msra.mxu0 0.0
    %1197 = vmatprep.subr.mxu0 0.0
    %1198 = vmatpush1.msra.mxu0 0.0
    %1199 = vmatprep.subr.mxu0 0.0
    %1200 = vmatpush1.msra.mxu0 0.0
    %1201 = vmatprep.subr.mxu0 0.0
    %1202 = vmatpush1.msra.mxu0 0.0
    %1203 = vmatprep.subr.mxu0 0.0
    %1204 = vmatpush1.msra.mxu0 0.0
    %1205 = vmatprep.subr.mxu0 0.0
    %1206 = vmatpush1.msra.mxu0 0.0
    %1207 = vmatprep.subr.mxu0 0.0
    %1208 = vmatpush1.msra.mxu0 0.0
    %1209 = vmatprep.subr.mxu0 0.0
    %1210 = vmatpush1.msra.mxu0 0.0
    %1211 = vmatprep.subr.mxu0 0.0
    %1212 = vmatpush1.msra.mxu0 0.0
    %1213 = vmatprep.subr.mxu0 0.0
    %1214 = vmatpush1.msra.mxu0 0.0
    %1215 = vmatprep.subr.mxu0 0.0
    %1216 = vmatpush1.msra.mxu0 0.0
    %1217 = vmatprep.subr.mxu0 0.0
    %1218 = vmatpush1.msra.mxu0 0.0
    %1219 = vmatprep.subr.mxu0 0.0
    %1220 = vmatpush1.msra.mxu0 0.0
    %1221 = vmatprep.subr.mxu0 0.0
    %1222 = vmatpush1.msra.mxu0 0.0
    %1223 = vmatprep.mubr.f32.mxu0 0.0
    %1224 = vmatmul.mubr.f32.gmra.mrb[0].mxu0 %v354
    %v1225 = vpop.f32.mrb[0].mxu0
    %v1226 = vadd.f32 0.0, %v1225
    %v1227 = vpop.f32.mrb[0].mxu0
    %1228 = vdwg.mxu0
    %v1229 = vlaneseq
    %v1230 = vshrl.u32 %v1229, 7
    %v1231 = vsub.s32 0, %v1230
    %v1232 = vrot.slane %v1226, %v1231
    %v1233 = vsub.f32 %v1145, %v1232
    %v1234 = vsub.f32 %v1148, %v1232
    %v1235 = vsub.f32 %v1153, %v1232
    %v1236 = vsub.f32 %v1156, %v1232
    %v1237 = vmul.f32 %v1233, %v1233
    %v1238 = vmul.f32 %v1234, %v1234
    %v1239 = vmul.f32 %v1235, %v1235
    %v1240 = vmul.f32 %v1236, %v1236
    %1241 = vmatprep.subr.mxu0 0.0
    %1242 = vmatpush1.msra.mxu0 %v1237
    %1243 = vmatprep.subr.mxu0 0.0
    %1244 = vmatpush1.msra.mxu0 %v1238
    %1245 = vmatprep.subr.mxu0 0.0
    %1246 = vmatpush1.msra.mxu0 %v1239
    %1247 = vmatprep.subr.mxu0 0.0
    %1248 = vmatpush1.msra.mxu0 %v1240
    %1249 = vmatprep.subr.mxu0 0.0
    %1250 = vmatpush1.msra.mxu0 0.0
    %1251 = vmatprep.subr.mxu0 0.0
    %1252 = vmatpush1.msra.mxu0 0.0
    %1253 = vmatprep.subr.mxu0 0.0
    %1254 = vmatpush1.msra.mxu0 0.0
    %1255 = vmatprep.subr.mxu0 0.0
    %1256 = vmatpush1.msra.mxu0 0.0
    %1257 = vmatprep.subr.mxu0 0.0
    %1258 = vmatpush1.msra.mxu0 0.0
    %1259 = vmatprep.subr.mxu0 0.0
    %1260 = vmatpush1.msra.mxu0 0.0
    %1261 = vmatprep.subr.mxu0 0.0
    %1262 = vmatpush1.msra.mxu0 0.0
    %1263 = vmatprep.subr.mxu0 0.0
    %1264 = vmatpush1.msra.mxu0 0.0
    %1265 = vmatprep.subr.mxu0 0.0
    %1266 = vmatpush1.msra.mxu0 0.0
    %1267 = vmatprep.subr.mxu0 0.0
    %1268 = vmatpush1.msra.mxu0 0.0
    %1269 = vmatprep.subr.mxu0 0.0
    %1270 = vmatpush1.msra.mxu0 0.0
    %1271 = vmatprep.subr.mxu0 0.0
    %1272 = vmatpush1.msra.mxu0 0.0
    %1273 = vmatprep.subr.mxu0 0.0
    %1274 = vmatpush1.msra.mxu0 0.0
    %1275 = vmatprep.subr.mxu0 0.0
    %1276 = vmatpush1.msra.mxu0 0.0
    %1277 = vmatprep.subr.mxu0 0.0
    %1278 = vmatpush1.msra.mxu0 0.0
    %1279 = vmatprep.subr.mxu0 0.0
    %1280 = vmatpush1.msra.mxu0 0.0
    %1281 = vmatprep.subr.mxu0 0.0
    %1282 = vmatpush1.msra.mxu0 0.0
    %1283 = vmatprep.subr.mxu0 0.0
    %1284 = vmatpush1.msra.mxu0 0.0
    %1285 = vmatprep.subr.mxu0 0.0
    %1286 = vmatpush1.msra.mxu0 0.0
    %1287 = vmatprep.subr.mxu0 0.0
    %1288 = vmatpush1.msra.mxu0 0.0
    %1289 = vmatprep.subr.mxu0 0.0
    %1290 = vmatpush1.msra.mxu0 0.0
    %1291 = vmatprep.subr.mxu0 0.0
    %1292 = vmatpush1.msra.mxu0 0.0
    %1293 = vmatprep.subr.mxu0 0.0
    %1294 = vmatpush1.msra.mxu0 0.0
    %1295 = vmatprep.subr.mxu0 0.0
    %1296 = vmatpush1.msra.mxu0 0.0
    %1297 = vmatprep.subr.mxu0 0.0
    %1298 = vmatpush1.msra.mxu0 0.0
    %1299 = vmatprep.subr.mxu0 0.0
    %1300 = vmatpush1.msra.mxu0 0.0
    %1301 = vmatprep.subr.mxu0 0.0
    %1302 = vmatpush1.msra.mxu0 0.0
    %1303 = vmatprep.subr.mxu0 0.0
    %1304 = vmatpush1.msra.mxu0 0.0
    %1305 = vmatprep.mubr.f32.mxu0 0.0
    %1306 = vmatmul.mubr.f32.gmra.mrb[0].mxu0 %v354
    %v1307 = vpop.f32.mrb[0].mxu0
    %v1308 = vadd.f32 1e-05, %v1307
    %v1309 = vpop.f32.mrb[0].mxu0
    %1310 = vdwg.mxu0
    %v1311 = vrsqrt.pop %v1308
    %v1312 = vlaneseq
    %v1313 = vshrl.u32 %v1312, 7
    %v1314 = vsub.s32 0, %v1313
    %v1315 = vrot.slane %v1311, %v1314
    %v1316 = vmul.f32 %v1233, %v1315
    %v1317 = vmul.f32 %v1234, %v1315
    %v1318 = vmul.f32 %v1235, %v1315
    %v1319 = vmul.f32 %v1236, %v1315
    %v1320 = vlaneseq
    %v1321 = vshrl.u32 %v1320, 7
    %v1322 = vsub.s32 6, %v1321
    %v1323 = vrot.slane %v57, %v1322
    %v1324 = vmul.f32 %v1316, %v1323
    %v1325 = vmul.f32 %v1317, %v1323
    %v1326 = vmul.f32 %v1318, %v1323
    %v1327 = vmul.f32 %v1319, %v1323
    %v1328 = vlaneseq
    %v1329 = vshrl.u32 %v1328, 7
    %v1330 = vsub.s32 1, %v1329
    %v1331 = vrot.slane %v58, %v1330
    %v1332 = vadd.f32 %v1324, %v1331
    %v1333 = vadd.f32 %v1325, %v1331
    %v1334 = vadd.f32 %v1326, %v1331
    %v1335 = vadd.f32 %v1327, %v1331
    %v1336 = vmax.f32 %v1332, 0.0
    %v1337 = vmax.f32 %v1333, 0.0
    %v1338 = vmax.f32 %v1334, 0.0
    %v1339 = vmax.f32 %v1335, 0.0
    %v1340 = vadd.f32 %v1336, %v1031
    %v1341 = vadd.f32 %v1337, %v1032
    %v1342 = vadd.f32 %v1338, %v1033
    %v1343 = vadd.f32 %v1339, %v1034
    %1348 = vrot.lane.b32.xlu0 %v722, 32
    %v1349 = vpop.permute.xlu0 %1348
    %1350 = vrot.lane.b32.xlu0 %v723, 32
    %v1351 = vpop.permute.xlu0 %1350
    %1352 = vrot.lane.b32.xlu0 %v724, 32
    %v1353 = vpop.permute.xlu0 %1352
    %1354 = vrot.lane.b32.xlu0 %v725, 32
    %v1355 = vpop.permute.xlu0 %1354
    %v1360 = vsel %vm149, %v1340, %v1349
    %v1361 = vsel %vm149, %v1341, %v1351
    %v1362 = vsel %vm149, %v1342, %v1353
    %v1363 = vsel %vm149, %v1343, %v1355
    %v1364 = vpack.c.bf16 %v1361, %v1360
    %v1365 = vpack.c.bf16 %v1363, %v1362
    %v1366 = vld [vmem:[%s2] sm:$0x1]
    %v1368 = vsel %vm149, %v1366, 0
    %1370 = vmatprep.subr.bf16.mxu0 0
    %1371 = vmatpush1.bf16.msra.mxu0 %v1364
    %1372 = vmatprep.subr.bf16.mxu0 0
    %1373 = vmatpush1.bf16.msra.mxu0 %v1365
    %1374 = vmatprep.subr.bf16.mxu0 0
    %1375 = vmatpush1.bf16.msra.mxu0 0
    %1376 = vmatprep.subr.bf16.mxu0 0
    %1377 = vmatpush1.bf16.msra.mxu0 0
    %1378 = vmatprep.subr.bf16.mxu0 0
    %1379 = vmatpush1.bf16.msra.mxu0 0
    %1380 = vmatprep.subr.bf16.mxu0 0
    %1381 = vmatpush1.bf16.msra.mxu0 0
    %1382 = vmatprep.subr.bf16.mxu0 0
    %1383 = vmatpush1.bf16.msra.mxu0 0
    %1384 = vmatprep.subr.bf16.mxu0 0
    %1385 = vmatpush1.bf16.msra.mxu0 0
    %1386 = vmatprep.subr.bf16.mxu0 0
    %1387 = vmatpush1.bf16.msra.mxu0 0
    %1388 = vmatprep.subr.bf16.mxu0 0
    %1389 = vmatpush1.bf16.msra.mxu0 0
    %1390 = vmatprep.subr.bf16.mxu0 0
    %1391 = vmatpush1.bf16.msra.mxu0 0
    %1392 = vmatprep.subr.bf16.mxu0 0
    %1393 = vmatpush1.bf16.msra.mxu0 0
    %1394 = vmatprep.subr.bf16.mxu0 0
    %1395 = vmatpush1.bf16.msra.mxu0 0
    %1396 = vmatprep.subr.bf16.mxu0 0
    %1397 = vmatpush1.bf16.msra.mxu0 0
    %1398 = vmatprep.subr.bf16.mxu0 0
    %1399 = vmatpush1.bf16.msra.mxu0 0
    %1400 = vmatprep.subr.bf16.mxu0 0
    %1401 = vmatpush1.bf16.msra.mxu0 0
    %1402 = vmatprep.mubr.bf16.mxu0 0
    %1403 = vmatmul.mubr.bf16.gmra.mrb[0].mxu0 %v1368
    %v1404 = vpop.f32.mrb[0].mxu0
    %v1405 = vadd.f32 0.0, %v1404
    %v1406 = vpop.f32.mrb[0].mxu0
    %v1407 = vpop.f32.mrb[0].mxu0
    %v1408 = vpop.f32.mrb[0].mxu0
    %1409 = vdwg.mxu0
    %v1410 = vpack.c.bf16 %v1405, %v1405
    %v1411 = vlaneseq
    %v1412 = vshrl.u32 %v1411, 7
    %v1413 = vsub.s32 5, %v1412
    %v1414 = vrot.slane %v58, %v1413
    %v1423 = vunpack.c.l.b16 %v49
    %v1424 = vunpack.c.l.b16 %v50
    %v1425 = vunpack.c.l.b16 %v51
    %v1426 = vunpack.c.l.b16 %v52
    %v1427 = vunpack.c.l.b16 %v53
    %v1428 = vunpack.c.l.b16 %v54
    %v1429 = vunpack.c.l.b16 %v55
    %v1430 = vunpack.c.l.b16 %v56
    %v1431 = vpack.c.b16 %v1424, %v1423
    %v1432 = vpack.c.b16 %v1426, %v1425
    %v1433 = vpack.c.b16 %v1428, %v1427
    %v1434 = vpack.c.b16 %v1430, %v1429
    %vm1439 = vcmask 523264
    %v1441 = vsel %vm1439, %v1410, 0
    %1443 = vmatprep.subr.bf16.mxu0 0
    %1444 = vmatpush1.bf16.msra.mxu0 %v1431
    %1445 = vmatprep.subr.bf16.mxu0 0
    %1446 = vmatpush1.bf16.msra.mxu0 %v1432
    %1447 = vmatprep.subr.bf16.mxu0 0
    %1448 = vmatpush1.bf16.msra.mxu0 %v1433
    %1449 = vmatprep.subr.bf16.mxu0 0
    %1450 = vmatpush1.bf16.msra.mxu0 %v1434
    %1451 = vmatprep.subr.bf16.mxu0 0
    %1452 = vmatpush1.bf16.msra.mxu0 0
    %1453 = vmatprep.subr.bf16.mxu0 0
    %1454 = vmatpush1.bf16.msra.mxu0 0
    %1455 = vmatprep.subr.bf16.mxu0 0
    %1456 = vmatpush1.bf16.msra.mxu0 0
    %1457 = vmatprep.subr.bf16.mxu0 0
    %1458 = vmatpush1.bf16.msra.mxu0 0
    %1459 = vmatprep.subr.bf16.mxu0 0
    %1460 = vmatpush1.bf16.msra.mxu0 0
    %1461 = vmatprep.subr.bf16.mxu0 0
    %1462 = vmatpush1.bf16.msra.mxu0 0
    %1463 = vmatprep.subr.bf16.mxu0 0
    %1464 = vmatpush1.bf16.msra.mxu0 0
    %1465 = vmatprep.subr.bf16.mxu0 0
    %1466 = vmatpush1.bf16.msra.mxu0 0
    %1467 = vmatprep.subr.bf16.mxu0 0
    %1468 = vmatpush1.bf16.msra.mxu0 0
    %1469 = vmatprep.subr.bf16.mxu0 0
    %1470 = vmatpush1.bf16.msra.mxu0 0
    %1471 = vmatprep.subr.bf16.mxu0 0
    %1472 = vmatpush1.bf16.msra.mxu0 0
    %1473 = vmatprep.subr.bf16.mxu0 0
    %1474 = vmatpush1.bf16.msra.mxu0 0
    %1475 = vmatprep.mubr.bf16.mxu0 0
    %1476 = vmatmul.mubr.bf16.gmra.mrb[0].mxu0 %v1441
    %v1477 = vpop.f32.mrb[0].mxu0
    %v1478 = vadd.f32 %v1414, %v1477
    %v1479 = vpop.f32.mrb[0].mxu0
    %v1480 = vpop.f32.mrb[0].mxu0
    %v1481 = vpop.f32.mrb[0].mxu0
    %1482 = vdwg.mxu0
    %vm1483 = vcmask 58368
    %1484 = vst.msk [vmem:[#allocation2] sm:$0x3] %vm1483, %v1478
    // Predicated region
    $region22: #{tpu_custom_call.1} parent=1 // pred_check
      _
    $region23: #{tpu_custom_call.1} parent=1 // pred_check_branch
      %1486 = sbr.rel (0) target = $region25
    $region24: #{tpu_custom_call.1} parent=1 // pred_region
      %s1488 = ssub.s32 32, 32
      %1489 = vsyncadd [#allocation3], %s1488
      %s1491 = sshll.u32 [#allocation2], 4
      %s1492 = int_to_ptr.vmem [resolvable:$true] %s1491
      %1494 = dma.vmem_to_hbm [thread:$0]  %s1492, 32, %s5, [#allocation3]
    $region25: #{tpu_custom_call.1} parent=1 // pred_fallthru
      _
    // Predicated region
    $region26: #{tpu_custom_call.1} parent=1 // pred_check
      _
    $region27: #{tpu_custom_call.1} parent=1 // pred_check_branch
      %1496 = sbr.rel (0) target = $region29
    $region28: #{tpu_custom_call.1} parent=1 // pred_region
      %1497 = dma.done [#allocation3], 32
    $region29: #{tpu_custom_call.1} parent=1 // pred_fallthru
      _
    %1498 = vsyncpa [#allocation3], 1

</llo_original>
